<compile_context>
chip_gen: v7x
topology: tpu7x:2x2x1
jax: 0.10.0
libtpu: 0.0.40
codegen_flags: <defaults>
</compile_context>

<pallas_src>
import jax
import jax.numpy as jnp
from jax.experimental import pallas as pl
from jax.experimental.pallas import tpu as pltpu

INPUT_DIM = 128
HIDDEN_DIMS = [64, 32, 16]
OUTPUT_DIM = 1
LANE = 128  # every hidden width is zero-padded up to one full vreg lane width


def mlp_kernel(x_ref, w123_ref, b123_ref, w4_ref, b4_ref, o_ref):
    # x_ref   : (tile_b, 128) f32
    # w123_ref: (128, 384)    bf16   [w1 | w2 | w3], each lane-padded to 128
    # b123_ref: (1, 384)      f32    [b1 | b2 | b3]
    # w4_ref  : (1, 128)      f32    final weight as a row
    # b4_ref  : (1, 1)        f32 in SMEM (scalar)
    # o_ref   : (1, tile_b)   f32    lane-dense output row
    h = x_ref[...]
    # Three (Linear + ReLU) layers on the MXU: bf16 inputs, f32 accumulate,
    # bias-add / ReLU in f32 (v5e's VPU has no bf16).
    for layer in range(3):
        lo, hi = layer * LANE, (layer + 1) * LANE
        h = jnp.dot(h.astype(jnp.bfloat16), w123_ref[:, lo:hi],
                    preferred_element_type=jnp.float32) + b123_ref[:, lo:hi]
        h = jnp.maximum(h, 0.0)
    # Final Linear (no ReLU): OUTPUT_DIM == 1, so an MXU matmul would be a
    # K=128, N=1 push/drain. Do it as VPU multiply + XLU lane-reduce, then
    # transpose (tile_b,1) -> (1,tile_b) so the HBM store is lane-dense.
    # (Keeping this epilogue from the previous passing version; switching it
    # to an MXU matvec is only worthwhile if bundles show the extended slot
    # saturating.)
    out_col = jnp.sum(h * w4_ref[...], axis=-1, keepdims=True) + b4_ref[0, 0]
    o_ref[...] = jnp.transpose(out_col)


def _cdiv(a, b):
    return -(-a // b)


def _round_up(n, m):
    return _cdiv(n, m) * m


def _pad2d(a, rows, cols):
    r, c = a.shape
    return jnp.pad(a, ((0, rows - r), (0, cols - c)))


def asi_david_forward(x, params, *, tile_b=2048):
    """x: (B, 128) float32. params: list of (W:(in,out), b:(1,out)) pairs.

    Returns (B, 1) float32, matching ASIDavid.forward (nn.Sequential MLP).
    """
    B, D = x.shape
    assert D == INPUT_DIM

    (w1, b1), (w2, b2), (w3, b3), (w4, b4) = params

    # One-time lane padding (hidden 64/32/16 -> 128) and packing. Zero padding
    # keeps the math exact: padded activation lanes are relu(0 + 0) = 0 and
    # only ever hit zero weight rows. Hidden weights are stored bf16 (explicit
    # MXU input precision); biases stay f32.
    w123 = jnp.concatenate(
        [_pad2d(w1, INPUT_DIM, LANE), _pad2d(w2, LANE, LANE), _pad2d(w3, LANE, LANE)],
        axis=1).astype(jnp.bfloat16)                       # (128, 384)
    b123 = jnp.concatenate(
        [_pad2d(b1, 1, LANE), _pad2d(b2, 1, LANE), _pad2d(b3, 1, LANE)],
        axis=1)                                            # (1, 384) f32
    w4row = jnp.transpose(_pad2d(w4, LANE, OUTPUT_DIM))    # (1, 128) f32
    b4s = b4.reshape(1, 1)                                 # (1, 1) f32 -> SMEM

    # Batch tiling:
    #  * big tiles amortize the ~0.35 us per-grid-step overhead,
    #  * capped at ~ceil(B/2) so there are >= 2 grid steps (both v7x TCs busy),
    #  * multiple of 128 rows (sublane friendly),
    #  * small odd tile counts bumped to even to avoid a lopsided 2-TC split.
    # No padding of x: Pallas handles the partial final block; those rows'
    # outputs are garbage and get sliced off below (rows are independent).
    tile_b = max(LANE, min(_round_up(tile_b, LANE),
                           _round_up(max(_cdiv(B, 2), LANE), LANE)))
    num_tiles = _cdiv(B, tile_b)
    if 1 < num_tiles < 8 and num_tiles % 2 == 1:
        tile_b = _round_up(_cdiv(B, num_tiles + 1), LANE)
        num_tiles = _cdiv(B, tile_b)

    const2d = lambda shape: pl.BlockSpec(shape, lambda i: (0, 0))

    out = pl.pallas_call(
        mlp_kernel,
        out_shape=jax.ShapeDtypeStruct((num_tiles, 1, tile_b), jnp.float32),
        grid_spec=pltpu.PrefetchScalarGridSpec(
            num_scalar_prefetch=0,
            grid=(num_tiles,),
            in_specs=[
                pl.BlockSpec((tile_b, INPUT_DIM), lambda i: (i, 0)),
                const2d(w123.shape),
                const2d(b123.shape),
                const2d(w4row.shape),
                pl.BlockSpec(memory_space=pltpu.MemorySpace.SMEM),
            ],
            # Lane-dense output: one (1, tile_b) row per grid step; the leading
            # grid dim is squeezed (None) so the kernel stores a full-lane slab.
            out_specs=pl.BlockSpec((None, 1, tile_b), lambda i: (i, 0, 0)),
        ),
        compiler_params=pltpu.CompilerParams(
            dimension_semantics=("parallel",)),
    )(x, w123, b123, w4row, b4s)

    # (num_tiles, 1, tile_b) -> (B, 1), dropping any padded-row garbage.
    return out.reshape(num_tiles * tile_b, 1)[:B]


def init_params(key):
    """Deterministic init; shapes follow the nn.Linear layers of ASIDavid.model."""
    dims = [INPUT_DIM] + HIDDEN_DIMS + [OUTPUT_DIM]
    params = []
    for i in range(len(dims) - 1):
        fan_in, fan_out = dims[i], dims[i + 1]
        key, kw, kb = jax.random.split(key, 3)
        bound = 1.0 / jnp.sqrt(fan_in)
        # Stored as (in, out) == transposed PyTorch weight (out, in).
        W = jax.random.uniform(kw, (fan_in, fan_out), jnp.float32, -bound, bound)
        b = jax.random.uniform(kb, (1, fan_out), jnp.float32, -bound, bound)
        params.append((W, b))
    return params


def reference_forward(x, params):
    # True f32 reference (HIGHEST precision matmuls), matching PyTorch/CPU.
    h = x
    for idx, (W, b) in enumerate(params):
        h = jnp.dot(h, W, precision=jax.lax.Precision.HIGHEST) + b
        if idx < len(params) - 1:
            h = jnp.maximum(h, 0.0)
    return h


if __name__ == "__main__":
    key = jax.random.PRNGKey(0)
    kx, kp = jax.random.split(key)

    # B not a multiple of the tile (exercises the partial final block, no pad)
    # and large enough for >= 2 grid steps (both TensorCores on v7x).
    B = 1000
    x = jax.random.normal(kx, (B, INPUT_DIM), dtype=jnp.float32)
    params = init_params(kp)

    out = asi_david_forward(x, params)
    out = jax.block_until_ready(out)

    ref = reference_forward(x, params)
    assert out.shape == (B, OUTPUT_DIM)
    # bf16 MXU inputs with f32 accumulation vs. the full-f32 reference: errors
    # are ~1e-3; 2e-2 tolerances leave a comfortable margin.
    assert jnp.allclose(out, ref, atol=2e-2, rtol=2e-2), \
        float(jnp.max(jnp.abs(out - ref)))

    print("KERNEL_OK")
</pallas_src>

<mosaic_0001>
module attributes {stable_mosaic.version = 11 : i64} {
  func.func @mlp_kernel(%arg0: i32, %arg1: memref<512x128xf32, #tpu.memory_space<vmem>>, %arg2: memref<128x384xbf16, #tpu.memory_space<vmem>>, %arg3: memref<1x384xf32, #tpu.memory_space<vmem>>, %arg4: memref<1x128xf32, #tpu.memory_space<vmem>>, %arg5: memref<1x1xf32, #tpu.memory_space<smem>>, %arg6: memref<1x1x512xf32, #tpu.memory_space<vmem>>) attributes {dimension_semantics = [#tpu.dimension_semantics<parallel>], iteration_bounds = array<i64: 2>, scalar_prefetch = 0 : i64, scratch_operands = 0 : i64, tpu.core_type = #tpu.core_type<tc>, window_params = [{transform_indices = @transform_0, window_bounds = array<i64: 512, 128>}, {pipeline_mode = #tpu.pipeline_mode<synchronous>, transform_indices = @transform_1, window_bounds = array<i64: 128, 384>}, {pipeline_mode = #tpu.pipeline_mode<synchronous>, transform_indices = @transform_2, window_bounds = array<i64: 1, 384>}, {pipeline_mode = #tpu.pipeline_mode<synchronous>, transform_indices = @transform_3, window_bounds = array<i64: 1, 128>}, {transform_indices = @transform_4, window_bounds = array<i64: 1, 1>}, {transform_indices = @transform_5, window_bounds = array<i64: 1, 1, 512>}]} {
    %c0 = arith.constant 0 : index
    %c0_0 = arith.constant 0 : index
    %0 = vector.load %arg1[%c0, %c0_0] : memref<512x128xf32, #tpu.memory_space<vmem>>, vector<512x128xf32>
    %1 = arith.truncf %0 : vector<512x128xf32> to vector<512x128xbf16>
    %c0_1 = arith.constant 0 : index
    %c0_2 = arith.constant 0 : index
    %2 = vector.load %arg2[%c0_1, %c0_2] : memref<128x384xbf16, #tpu.memory_space<vmem>>, vector<128x128xbf16>
    %cst = arith.constant dense<0.000000e+00> : vector<512x128xf32>
    %3 = tpu.matmul %1, %2, %cst {dimension_numbers = #tpu.dot_dimension_numbers<[1], [0], [0], [1], [0, 0, 1, 1], [], []>} : vector<512x128xbf16>, vector<128x128xbf16>, vector<512x128xf32> -> vector<512x128xf32>
    %c0_3 = arith.constant 0 : index
    %c0_4 = arith.constant 0 : index
    %4 = vector.load %arg3[%c0_3, %c0_4] : memref<1x384xf32, #tpu.memory_space<vmem>>, vector<1x128xf32>
    %5 = vector.broadcast %4 : vector<1x128xf32> to vector<512x128xf32>
    %6 = arith.addf %3, %5 : vector<512x128xf32>
    %cst_5 = arith.constant 0.000000e+00 : f32
    %7 = vector.broadcast %cst_5 : f32 to vector<512x128xf32>
    %8 = arith.maximumf %6, %7 : vector<512x128xf32>
    %9 = arith.truncf %8 : vector<512x128xf32> to vector<512x128xbf16>
    %c0_6 = arith.constant 0 : index
    %c128 = arith.constant 128 : index
    %10 = vector.load %arg2[%c0_6, %c128] : memref<128x384xbf16, #tpu.memory_space<vmem>>, vector<128x128xbf16>
    %cst_7 = arith.constant dense<0.000000e+00> : vector<512x128xf32>
    %11 = tpu.matmul %9, %10, %cst_7 {dimension_numbers = #tpu.dot_dimension_numbers<[1], [0], [0], [1], [0, 0, 1, 1], [], []>} : vector<512x128xbf16>, vector<128x128xbf16>, vector<512x128xf32> -> vector<512x128xf32>
    %c0_8 = arith.constant 0 : index
    %c128_9 = arith.constant 128 : index
    %12 = vector.load %arg3[%c0_8, %c128_9] : memref<1x384xf32, #tpu.memory_space<vmem>>, vector<1x128xf32>
    %13 = vector.broadcast %12 : vector<1x128xf32> to vector<512x128xf32>
    %14 = arith.addf %11, %13 : vector<512x128xf32>
    %cst_10 = arith.constant 0.000000e+00 : f32
    %15 = vector.broadcast %cst_10 : f32 to vector<512x128xf32>
    %16 = arith.maximumf %14, %15 : vector<512x128xf32>
    %17 = arith.truncf %16 : vector<512x128xf32> to vector<512x128xbf16>
    %c0_11 = arith.constant 0 : index
    %c256 = arith.constant 256 : index
    %18 = vector.load %arg2[%c0_11, %c256] : memref<128x384xbf16, #tpu.memory_space<vmem>>, vector<128x128xbf16>
    %cst_12 = arith.constant dense<0.000000e+00> : vector<512x128xf32>
    %19 = tpu.matmul %17, %18, %cst_12 {dimension_numbers = #tpu.dot_dimension_numbers<[1], [0], [0], [1], [0, 0, 1, 1], [], []>} : vector<512x128xbf16>, vector<128x128xbf16>, vector<512x128xf32> -> vector<512x128xf32>
    %c0_13 = arith.constant 0 : index
    %c256_14 = arith.constant 256 : index
    %20 = vector.load %arg3[%c0_13, %c256_14] : memref<1x384xf32, #tpu.memory_space<vmem>>, vector<1x128xf32>
    %21 = vector.broadcast %20 : vector<1x128xf32> to vector<512x128xf32>
    %22 = arith.addf %19, %21 : vector<512x128xf32>
    %cst_15 = arith.constant 0.000000e+00 : f32
    %23 = vector.broadcast %cst_15 : f32 to vector<512x128xf32>
    %24 = arith.maximumf %22, %23 : vector<512x128xf32>
    %c0_16 = arith.constant 0 : index
    %c0_17 = arith.constant 0 : index
    %25 = vector.load %arg4[%c0_16, %c0_17] : memref<1x128xf32, #tpu.memory_space<vmem>>, vector<1x128xf32>
    %26 = vector.broadcast %25 : vector<1x128xf32> to vector<512x128xf32>
    %27 = arith.mulf %24, %26 : vector<512x128xf32>
    %cst_18 = arith.constant dense<0.000000e+00> : vector<512xf32>
    %28 = vector.multi_reduction <add>, %27, %cst_18 [1] : vector<512x128xf32> to vector<512xf32>
    %29 = vector.shape_cast %28 : vector<512xf32> to vector<512x1xf32>
    %c0_19 = arith.constant 0 : index
    %c0_20 = arith.constant 0 : index
    %30 = memref.load %arg5[%c0_19, %c0_20] : memref<1x1xf32, #tpu.memory_space<smem>>
    %31 = vector.broadcast %30 : f32 to vector<512x1xf32>
    %32 = arith.addf %29, %31 : vector<512x1xf32>
    %33 = tpu.transpose %32, [1, 0] : vector<512x1xf32> -> vector<1x512xf32>
    %c0_21 = arith.constant 0 : index
    %c0_22 = arith.constant 0 : index
    %c0_23 = arith.constant 0 : index
    %34 = vector.load %arg6[%c0_21, %c0_22, %c0_23] : memref<1x1x512xf32, #tpu.memory_space<vmem>>, vector<1x1x512xf32>
    %35 = vector.shape_cast %34 : vector<1x1x512xf32> to vector<1x512xf32>
    %36 = vector.shape_cast %33 : vector<1x512xf32> to vector<1x1x512xf32>
    tpu.vector_store %arg6[%c0_21, %c0_22, %c0_23], %36 {strides = array<i32>} : memref<1x1x512xf32, #tpu.memory_space<vmem>>, vector<1x1x512xf32>,
    return
  }
  func.func @transform_0(%arg0: i32) -> (i32, i32) {
    %c0_i32 = arith.constant 0 : i32
    %c0_i32_0 = arith.constant 0 : i32
    return %arg0, %c0_i32 : i32, i32
  }
  func.func @transform_1(%arg0: i32) -> (i32, i32) {
    %c0_i32 = arith.constant 0 : i32
    %c0_i32_0 = arith.constant 0 : i32
    %c0_i32_1 = arith.constant 0 : i32
    return %c0_i32, %c0_i32_0 : i32, i32
  }
  func.func @transform_2(%arg0: i32) -> (i32, i32) {
    %c0_i32 = arith.constant 0 : i32
    %c0_i32_0 = arith.constant 0 : i32
    %c0_i32_1 = arith.constant 0 : i32
    return %c0_i32, %c0_i32_0 : i32, i32
  }
  func.func @transform_3(%arg0: i32) -> (i32, i32) {
    %c0_i32 = arith.constant 0 : i32
    %c0_i32_0 = arith.constant 0 : i32
    %c0_i32_1 = arith.constant 0 : i32
    return %c0_i32, %c0_i32_0 : i32, i32
  }
  func.func @transform_4(%arg0: i32) -> (i32, i32) {
    %c0_i32 = arith.constant 0 : i32
    %c0_i32_0 = arith.constant 0 : i32
    %c0_i32_1 = arith.constant 0 : i32
    return %c0_i32, %c0_i32_0 : i32, i32
  }
  func.func @transform_5(%arg0: i32) -> (i32, i32, i32) {
    %c0_i32 = arith.constant 0 : i32
    %c0_i32_0 = arith.constant 0 : i32
    %c0_i32_1 = arith.constant 0 : i32
    return %arg0, %c0_i32, %c0_i32_0 : i32, i32, i32
  }
}

</mosaic_0001>

<llo_original>
// kernel: tpu_custom_call.1
$region0: #{tpu_custom_call.1}
  #allocation0 [shape = 'u32[]', space=smem, size = 0x4, offset = 0x4, fixed_abs, tag = 'smem constant byte address 0x4 - core index']
  #allocation1 [shape = 'u32[144,128]{1,0:T(1,128)}', space=vmem, size = 0x12000, scoped, tag = 'internal scratch']
  #allocation2 [shape = 'f32[1,1]{1,0:T(1,128)S(6)}', space=smem, size = 0x200, scoped, tag = 'scoped memory for tpu_custom_call.1']
  %s0 = inlined_call_operand.hbm [shape: f32[1000,128], index: 0, kind: input, shape index: {}]
  %s1 = inlined_call_operand.hbm [shape: bf16[128,384], index: 1, kind: input, shape index: {}]
  %s2 = inlined_call_operand.vmem [shape: f32[1,384], index: 2, kind: input, shape index: {}]
  %s3 = inlined_call_operand.vmem [shape: f32[1,128], index: 3, kind: input, shape index: {}]
  %s4 = inlined_call_operand.<no memory space> [shape: f32[1,1], index: 4, kind: input, shape index: {}]
  %s5 = inlined_call_operand.hbm [shape: f32[2,1,512], index: 5, kind: output, shape index: {}]
  %s6 = sld [smem:[#allocation0]]
  $region61: #{tpu_custom_call.1} parent=0
    _
  %s8 = ssub.s32 1, %s6
  %s9 = scalar_select 0, %s8, %s6
  %10 = sst [smem:[#allocation2]] %s4
  $region1: #{tpu_custom_call.1} parent=0
    #allocation3 [shape = 'u8[524288]{0}', space=vmem, size = 0x80000, scoped, tag = 'input window, operand 0']
    #allocation4 [shape = 's32[2]{0}', space=sflag, size = 0x8, scoped, tag = 'scoped memory for tpu_custom_call.1']
    #allocation5 [shape = 's32[2]{0}', space=sflag, size = 0x8, scoped, tag = 'scoped memory for tpu_custom_call.1']
    #allocation6 [shape = 'u8[98304]{0}', space=vmem, size = 0x18000, scoped, tag = 'input window, operand 1, single buffered']
    #allocation7 [shape = 's32[1]{0}', space=sflag, size = 0x4, scoped, tag = 'scoped memory for tpu_custom_call.1']
    #allocation8 [shape = 'u8[4096]{0}', space=vmem, size = 0x1000, scoped, tag = 'output window, operand 0']
    %11 = vsyncpa [#allocation4], 0
    %s12 = scalar_lea.sflag [#allocation4], 1
    %13 = vsyncpa %s12, 0
    %14 = vsyncpa [#allocation7], 0
    %15 = vsyncpa [#allocation5], 0
    %s16 = scalar_lea.sflag [#allocation5], 1
    %17 = vsyncpa %s16, 0
    loop: start=0, step=1, limit=4
    $region2: #{tpu_custom_call.1} parent=1 // loop_pre_header
      _
    $region3: #{tpu_custom_call.1} parent=1 // loop_header
      %s19 = sphi 0, %s23
      %p20 = scmp.ge.s32.totalorder %s19, 4
      %s29 = sphi 0, %s31
      %s32 = sphi 0, %s29
      %s33 = sphi 0, %s32
      %s49 = sphi 0, %s33
      %s53 = sphi 0, %s53
      %s55 = sphi 0, %s53
      %s56 = sphi 0, %s55
      %s70 = sphi 0, %s56
      %s74 = sphi 0, %s74
      %s76 = sphi 0, %s74
      %s77 = sphi 0, %s76
      %s91 = sphi 0, %s77
      %s95 = sphi 0, %s95
      %s97 = sphi 0, %s95
      %s98 = sphi 0, %s97
      %s112 = sphi 0, %s98
      %s116 = sphi 0, %s116
      %s118 = sphi 0, %s116
      %s119 = sphi 0, %s118
      %s133 = sphi 0, %s119
      %s139 = sphi 0, %s141
      %s142 = sphi 0, %s139
      %s143 = sphi 0, %s142
      %s159 = sphi 0, %s143
    $region4: #{tpu_custom_call.1} parent=1 // loop_header_branch
      %22 = sbr.rel (%p20) target = $region8
    $region5: #{tpu_custom_call.1} parent=1 // loop_body
      %s24 = ssub.s32 %s19, 1
      %s25 = ssub.s32 %s19, 2
      %s26 = sadd.s32 %s19, 1
      %s27 = ssub.s32 %s19, %s26
      %p28 = scmp.eq.s32.totalorder %s27, 0
      %s30 = sadd.s32 %s29, 1
      %s31 = scalar_select %p28, %s29, %s30
      %p34 = pneg %p28
      %p35 = scmp.eq.s32.totalorder %s19, 1
      %p36 = por %p34, %p35
      %p37 = scmp.ne.s32.totalorder %s29, %s32
      %p38 = scmp.eq.s32.totalorder %s19, 0
      %p39 = por %p37, %p38
      %p40 = scmp.ne.s32.totalorder %s29, %s32
      %p41 = scmp.eq.s32.totalorder %s24, 1
      %p42 = por %p40, %p41
      %p43 = scmp.ne.s32.totalorder %s32, %s33
      %p44 = scmp.eq.s32.totalorder %s24, 0
      %p45 = por %p43, %p44
      %p46 = scmp.ne.s32.totalorder %s32, %s33
      %p47 = scmp.eq.s32.totalorder %s25, 1
      %p48 = por %p46, %p47
      %p50 = scmp.ne.s32.totalorder %s33, %s49
      %p51 = scmp.eq.s32.totalorder %s25, 0
      %p52 = por %p50, %p51
      %s54 = sadd.s32 %s53, 1
      %p57 = scmp.eq.s32.totalorder %s19, 1
      %p58 = scmp.ne.s32.totalorder %s53, %s55
      %p59 = scmp.eq.s32.totalorder %s19, 0
      %p60 = por %p58, %p59
      %p61 = scmp.ne.s32.totalorder %s53, %s55
      %p62 = scmp.eq.s32.totalorder %s24, 1
      %p63 = por %p61, %p62
      %p64 = scmp.ne.s32.totalorder %s55, %s56
      %p65 = scmp.eq.s32.totalorder %s24, 0
      %p66 = por %p64, %p65
      %p67 = scmp.ne.s32.totalorder %s55, %s56
      %p68 = scmp.eq.s32.totalorder %s25, 1
      %p69 = por %p67, %p68
      %p71 = scmp.ne.s32.totalorder %s56, %s70
      %p72 = scmp.eq.s32.totalorder %s25, 0
      %p73 = por %p71, %p72
      %s75 = sadd.s32 %s74, 1
      %p78 = scmp.eq.s32.totalorder %s19, 1
      %p79 = scmp.ne.s32.totalorder %s74, %s76
      %p80 = scmp.eq.s32.totalorder %s19, 0
      %p81 = por %p79, %p80
      %p82 = scmp.ne.s32.totalorder %s74, %s76
      %p83 = scmp.eq.s32.totalorder %s24, 1
      %p84 = por %p82, %p83
      %p85 = scmp.ne.s32.totalorder %s76, %s77
      %p86 = scmp.eq.s32.totalorder %s24, 0
      %p87 = por %p85, %p86
      %p88 = scmp.ne.s32.totalorder %s76, %s77
      %p89 = scmp.eq.s32.totalorder %s25, 1
      %p90 = por %p88, %p89
      %p92 = scmp.ne.s32.totalorder %s77, %s91
      %p93 = scmp.eq.s32.totalorder %s25, 0
      %p94 = por %p92, %p93
      %s96 = sadd.s32 %s95, 1
      %p99 = scmp.eq.s32.totalorder %s19, 1
      %p100 = scmp.ne.s32.totalorder %s95, %s97
      %p101 = scmp.eq.s32.totalorder %s19, 0
      %p102 = por %p100, %p101
      %p103 = scmp.ne.s32.totalorder %s95, %s97
      %p104 = scmp.eq.s32.totalorder %s24, 1
      %p105 = por %p103, %p104
      %p106 = scmp.ne.s32.totalorder %s97, %s98
      %p107 = scmp.eq.s32.totalorder %s24, 0
      %p108 = por %p106, %p107
      %p109 = scmp.ne.s32.totalorder %s97, %s98
      %p110 = scmp.eq.s32.totalorder %s25, 1
      %p111 = por %p109, %p110
      %p113 = scmp.ne.s32.totalorder %s98, %s112
      %p114 = scmp.eq.s32.totalorder %s25, 0
      %p115 = por %p113, %p114
      %s117 = sadd.s32 %s116, 1
      %p120 = scmp.eq.s32.totalorder %s19, 1
      %p121 = scmp.ne.s32.totalorder %s116, %s118
      %p122 = scmp.eq.s32.totalorder %s19, 0
      %p123 = por %p121, %p122
      %p124 = scmp.ne.s32.totalorder %s116, %s118
      %p125 = scmp.eq.s32.totalorder %s24, 1
      %p126 = por %p124, %p125
      %p127 = scmp.ne.s32.totalorder %s118, %s119
      %p128 = scmp.eq.s32.totalorder %s24, 0
      %p129 = por %p127, %p128
      %p130 = scmp.ne.s32.totalorder %s118, %s119
      %p131 = scmp.eq.s32.totalorder %s25, 1
      %p132 = por %p130, %p131
      %p134 = scmp.ne.s32.totalorder %s119, %s133
      %p135 = scmp.eq.s32.totalorder %s25, 0
      %p136 = por %p134, %p135
      %s137 = ssub.s32 %s19, %s26
      %p138 = scmp.eq.s32.totalorder %s137, 0
      %s140 = sadd.s32 %s139, 1
      %s141 = scalar_select %p138, %s139, %s140
      %p144 = pneg %p138
      %p145 = scmp.eq.s32.totalorder %s19, 1
      %p146 = por %p144, %p145
      %p147 = scmp.ne.s32.totalorder %s139, %s142
      %p148 = scmp.eq.s32.totalorder %s19, 0
      %p149 = por %p147, %p148
      %p150 = scmp.ne.s32.totalorder %s139, %s142
      %p151 = scmp.eq.s32.totalorder %s24, 1
      %p152 = por %p150, %p151
      %p153 = scmp.ne.s32.totalorder %s142, %s143
      %p154 = scmp.eq.s32.totalorder %s24, 0
      %p155 = por %p153, %p154
      %p156 = scmp.ne.s32.totalorder %s142, %s143
      %p157 = scmp.eq.s32.totalorder %s25, 1
      %p158 = por %p156, %p157
      %p160 = scmp.ne.s32.totalorder %s143, %s159
      %p161 = scmp.eq.s32.totalorder %s25, 0
      %p162 = por %p160, %p161
      %p163 = scmp.le.s32.totalorder 1, %s19
      %p164 = scmp.lt.s32.totalorder %s19, 3
      %p165 = pnand %p163, %p164
      %p166 = pneg %p165
      // Predicated region
      $region9: #{tpu_custom_call.1} parent=5 // pred_check
        _
      $region10: #{tpu_custom_call.1} parent=5 // pred_check_branch
        %168 = sbr.rel (%p165) target = $region12
      $region11: #{tpu_custom_call.1} parent=5 // pred_region
        %s169 = ssub.s32 %s19, 1
        // Predicated region
        $region13: #{tpu_custom_call.1} parent=11 // pred_check
          %p170 = pneg %p66
        $region14: #{tpu_custom_call.1} parent=11 // pred_check_branch
          %172 = sbr.rel (%p170) target = $region16
        $region15: #{tpu_custom_call.1} parent=11 // pred_region
          %s174 = ssub.s32 3072, 3072
          %175 = vsyncadd [#allocation7], %s174
          %s176 = sshll.u32 [#allocation6], 4
          %s177 = int_to_ptr.vmem [resolvable:$true] %s176
          %182 = dma.hbm_to_vmem [thread:$0]  %s1, 3072, %s177, [#allocation7], 192, 192, 12
        $region16: #{tpu_custom_call.1} parent=11 // pred_fallthru
          _
        // Predicated region
        $region17: #{tpu_custom_call.1} parent=11 // pred_check
          %p183 = pneg %p87
        $region18: #{tpu_custom_call.1} parent=11 // pred_check_branch
          %185 = sbr.rel (%p183) target = $region20
        $region19: #{tpu_custom_call.1} parent=11 // pred_region
          _
        $region20: #{tpu_custom_call.1} parent=11 // pred_fallthru
          _
        // Predicated region
        $region21: #{tpu_custom_call.1} parent=11 // pred_check
          %p186 = pneg %p108
        $region22: #{tpu_custom_call.1} parent=11 // pred_check_branch
          %188 = sbr.rel (%p186) target = $region24
        $region23: #{tpu_custom_call.1} parent=11 // pred_region
          _
        $region24: #{tpu_custom_call.1} parent=11 // pred_fallthru
          _
        // Predicated region
        $region25: #{tpu_custom_call.1} parent=11 // pred_check
          %p189 = pneg %p129
        $region26: #{tpu_custom_call.1} parent=11 // pred_check_branch
          %191 = sbr.rel (%p189) target = $region28
        $region27: #{tpu_custom_call.1} parent=11 // pred_region
          _
        $region28: #{tpu_custom_call.1} parent=11 // pred_fallthru
          _
      $region12: #{tpu_custom_call.1} parent=5 // pred_fallthru
        _
      %p192 = scmp.lt.s32.totalorder %s19, 2
      // Predicated region
      $region29: #{tpu_custom_call.1} parent=5 // pred_check
        %p193 = pneg %p192
      $region30: #{tpu_custom_call.1} parent=5 // pred_check_branch
        %195 = sbr.rel (%p193) target = $region32
      $region31: #{tpu_custom_call.1} parent=5 // pred_region
        // Predicated region
        $region33: #{tpu_custom_call.1} parent=31 // pred_check
          %p196 = pneg %p39
        $region34: #{tpu_custom_call.1} parent=31 // pred_check_branch
          %198 = sbr.rel (%p196) target = $region36
        $region35: #{tpu_custom_call.1} parent=31 // pred_region
          %s199 = sand.u32 %s29, 1
          %s200 = scalar_lea.sflag [#allocation4], %s199
          %s201 = sand.u32 %s29, 1
          %s202 = smul.addr %s201, 512
          %s203 = scalar_lea.vmem [#allocation3], %s202
          %s204 = smul.u32 64, %s19
          %s205 = ssub.s32 125, %s204
          %p206 = scmp.lt.s32.totalorder %s205, 64
          %s207 = scalar_select %p206, %s205, 64
          %s208 = smul.u32 128, %s207
          %s210 = ssub.s32 8192, %s208
          %211 = vsyncadd %s200, %s210
          %p212 = scmp.ne.s32.totalorder 0, %s208
          %s213 = smul.addr %s204, 128
          %s214 = scalar_lea.hbm %s0, %s213
          %s215 = smul.u32 8, %s207
          %s216 = sshll.u32 %s203, 4
          %s217 = int_to_ptr.vmem [resolvable:$true] %s216
          %s218 = sshll.u32 %s215, 4
          %222 = dma.hbm_to_vmem [thread:$0]  (%p212), %s214, %s218, %s217, %s200, 128, 128, 8
        $region36: #{tpu_custom_call.1} parent=31 // pred_fallthru
          _
      $region32: #{tpu_custom_call.1} parent=5 // pred_fallthru
        _
      %p223 = scmp.le.s32.totalorder 1, %s19
      %p224 = scmp.lt.s32.totalorder %s19, 3
      %p225 = pnand %p223, %p224
      %p226 = pneg %p225
      // Predicated region
      $region37: #{tpu_custom_call.1} parent=5 // pred_check
        _
      $region38: #{tpu_custom_call.1} parent=5 // pred_check_branch
        %228 = sbr.rel (%p225) target = $region40
      $region39: #{tpu_custom_call.1} parent=5 // pred_region
        %s229 = ssub.s32 %s19, 1
        %s230 = sand.u32 %s32, 1
        %s231 = scalar_lea.sflag [#allocation4], %s230
        %s232 = sand.u32 %s32, 1
        %s233 = smul.addr %s232, 512
        %s234 = scalar_lea.vmem [#allocation3], %s233
        // Predicated region
        $region41: #{tpu_custom_call.1} parent=39 // pred_check
          %p235 = pneg %p45
        $region42: #{tpu_custom_call.1} parent=39 // pred_check_branch
          %237 = sbr.rel (%p235) target = $region44
        $region43: #{tpu_custom_call.1} parent=39 // pred_region
          %238 = dma.done %s231, 8192
        $region44: #{tpu_custom_call.1} parent=39 // pred_fallthru
          _
        // Predicated region
        $region45: #{tpu_custom_call.1} parent=39 // pred_check
          %p239 = pneg %p66
        $region46: #{tpu_custom_call.1} parent=39 // pred_check_branch
          %241 = sbr.rel (%p239) target = $region48
        $region47: #{tpu_custom_call.1} parent=39 // pred_region
          %242 = dma.done [#allocation7], 3072
        $region48: #{tpu_custom_call.1} parent=39 // pred_fallthru
          _
        %s243 = sand.u32 %s32, 1
        %s244 = scalar_lea.sflag [#allocation4], %s243
        %s245 = sand.u32 %s32, 1
        %s246 = smul.addr %s245, 512
        %s247 = scalar_lea.vmem [#allocation3], %s246
        %p248 = pneg %p45
        %p249 = pneg %p42
        %p250 = pneg %p66
        %p251 = pneg %p63
        %p252 = pneg %p87
        %p253 = pneg %p84
        %p254 = pneg %p108
        %p255 = pneg %p105
        %p256 = pneg %p129
        %p257 = pneg %p126
        %p258 = pneg %p155
        %p259 = pneg %p152
        %s260 = sand.u32 %s142, 1
        %s261 = scalar_lea.sflag [#allocation5], %s260
        %s262 = sand.u32 %s142, 1
        %s263 = smul.addr %s262, 4
        %s264 = scalar_lea.vmem [#allocation8], %s263
        %s265 = smul.u32 64, %s24
        %s266 = ssub.s32 125, %s265
        %p267 = scmp.lt.s32.totalorder %s266, 64
        %s268 = scalar_select %p267, %s266, 64
        %s269 = smul.u32 128, %s268
        %v271 = vld [vmem:[%s234] sm:$0xff]
        %v272 = vld [vmem:[%s234 + $0x8] sm:$0xff]
        %v273 = vld [vmem:[%s234 + $0x10] sm:$0xff]
        %v274 = vld [vmem:[%s234 + $0x18] sm:$0xff]
        %v275 = vld [vmem:[%s234 + $0x20] sm:$0xff]
        %v276 = vld [vmem:[%s234 + $0x28] sm:$0xff]
        %v277 = vld [vmem:[%s234 + $0x30] sm:$0xff]
        %v278 = vld [vmem:[%s234 + $0x38] sm:$0xff]
        %v279 = vld [vmem:[%s234 + $0x40] sm:$0xff]
        %v280 = vld [vmem:[%s234 + $0x48] sm:$0xff]
        %v281 = vld [vmem:[%s234 + $0x50] sm:$0xff]
        %v282 = vld [vmem:[%s234 + $0x58] sm:$0xff]
        %v283 = vld [vmem:[%s234 + $0x60] sm:$0xff]
        %v284 = vld [vmem:[%s234 + $0x68] sm:$0xff]
        %v285 = vld [vmem:[%s234 + $0x70] sm:$0xff]
        %v286 = vld [vmem:[%s234 + $0x78] sm:$0xff]
        %v287 = vld [vmem:[%s234 + $0x80] sm:$0xff]
        %v288 = vld [vmem:[%s234 + $0x88] sm:$0xff]
        %v289 = vld [vmem:[%s234 + $0x90] sm:$0xff]
        %v290 = vld [vmem:[%s234 + $0x98] sm:$0xff]
        %v291 = vld [vmem:[%s234 + $0xa0] sm:$0xff]
        %v292 = vld [vmem:[%s234 + $0xa8] sm:$0xff]
        %v293 = vld [vmem:[%s234 + $0xb0] sm:$0xff]
        %v294 = vld [vmem:[%s234 + $0xb8] sm:$0xff]
        %v295 = vld [vmem:[%s234 + $0xc0] sm:$0xff]
        %v296 = vld [vmem:[%s234 + $0xc8] sm:$0xff]
        %v297 = vld [vmem:[%s234 + $0xd0] sm:$0xff]
        %v298 = vld [vmem:[%s234 + $0xd8] sm:$0xff]
        %v299 = vld [vmem:[%s234 + $0xe0] sm:$0xff]
        %v300 = vld [vmem:[%s234 + $0xe8] sm:$0xff]
        %v301 = vld [vmem:[%s234 + $0xf0] sm:$0xff]
        %v302 = vld [vmem:[%s234 + $0xf8] sm:$0xff]
        %v303 = vld [vmem:[%s234 + $0x100] sm:$0xff]
        %v304 = vld [vmem:[%s234 + $0x108] sm:$0xff]
        %v305 = vld [vmem:[%s234 + $0x110] sm:$0xff]
        %v306 = vld [vmem:[%s234 + $0x118] sm:$0xff]
        %v307 = vld [vmem:[%s234 + $0x120] sm:$0xff]
        %v308 = vld [vmem:[%s234 + $0x128] sm:$0xff]
        %v309 = vld [vmem:[%s234 + $0x130] sm:$0xff]
        %v310 = vld [vmem:[%s234 + $0x138] sm:$0xff]
        %v311 = vld [vmem:[%s234 + $0x140] sm:$0xff]
        %v312 = vld [vmem:[%s234 + $0x148] sm:$0xff]
        %v313 = vld [vmem:[%s234 + $0x150] sm:$0xff]
        %v314 = vld [vmem:[%s234 + $0x158] sm:$0xff]
        %v315 = vld [vmem:[%s234 + $0x160] sm:$0xff]
        %v316 = vld [vmem:[%s234 + $0x168] sm:$0xff]
        %v317 = vld [vmem:[%s234 + $0x170] sm:$0xff]
        %v318 = vld [vmem:[%s234 + $0x178] sm:$0xff]
        %v319 = vld [vmem:[%s234 + $0x180] sm:$0xff]
        %v320 = vld [vmem:[%s234 + $0x188] sm:$0xff]
        %v321 = vld [vmem:[%s234 + $0x190] sm:$0xff]
        %v322 = vld [vmem:[%s234 + $0x198] sm:$0xff]
        %v323 = vld [vmem:[%s234 + $0x1a0] sm:$0xff]
        %v324 = vld [vmem:[%s234 + $0x1a8] sm:$0xff]
        %v325 = vld [vmem:[%s234 + $0x1b0] sm:$0xff]
        %v326 = vld [vmem:[%s234 + $0x1b8] sm:$0xff]
        %v327 = vld [vmem:[%s234 + $0x1c0] sm:$0xff]
        %v328 = vld [vmem:[%s234 + $0x1c8] sm:$0xff]
        %v329 = vld [vmem:[%s234 + $0x1d0] sm:$0xff]
        %v330 = vld [vmem:[%s234 + $0x1d8] sm:$0xff]
        %v331 = vld [vmem:[%s234 + $0x1e0] sm:$0xff]
        %v332 = vld [vmem:[%s234 + $0x1e8] sm:$0xff]
        %v333 = vld [vmem:[%s234 + $0x1f0] sm:$0xff]
        %v334 = vld [vmem:[%s234 + $0x1f8] sm:$0xff]
        %v335 = vpack.c.bf16 %v272, %v271
        %v336 = vpack.c.bf16 %v274, %v273
        %v337 = vpack.c.bf16 %v276, %v275
        %v338 = vpack.c.bf16 %v278, %v277
        %v339 = vpack.c.bf16 %v280, %v279
        %v340 = vpack.c.bf16 %v282, %v281
        %v341 = vpack.c.bf16 %v284, %v283
        %v342 = vpack.c.bf16 %v286, %v285
        %v343 = vpack.c.bf16 %v288, %v287
        %v344 = vpack.c.bf16 %v290, %v289
        %v345 = vpack.c.bf16 %v292, %v291
        %v346 = vpack.c.bf16 %v294, %v293
        %v347 = vpack.c.bf16 %v296, %v295
        %v348 = vpack.c.bf16 %v298, %v297
        %v349 = vpack.c.bf16 %v300, %v299
        %v350 = vpack.c.bf16 %v302, %v301
        %v351 = vpack.c.bf16 %v304, %v303
        %v352 = vpack.c.bf16 %v306, %v305
        %v353 = vpack.c.bf16 %v308, %v307
        %v354 = vpack.c.bf16 %v310, %v309
        %v355 = vpack.c.bf16 %v312, %v311
        %v356 = vpack.c.bf16 %v314, %v313
        %v357 = vpack.c.bf16 %v316, %v315
        %v358 = vpack.c.bf16 %v318, %v317
        %v359 = vpack.c.bf16 %v320, %v319
        %v360 = vpack.c.bf16 %v322, %v321
        %v361 = vpack.c.bf16 %v324, %v323
        %v362 = vpack.c.bf16 %v326, %v325
        %v363 = vpack.c.bf16 %v328, %v327
        %v364 = vpack.c.bf16 %v330, %v329
        %v365 = vpack.c.bf16 %v332, %v331
        %v366 = vpack.c.bf16 %v334, %v333
        %v367 = vld [vmem:[#allocation6] sm:$0xf]
        %v368 = vld [vmem:[#allocation6 + $0xc] sm:$0xf]
        %v369 = vld [vmem:[#allocation6 + $0x18] sm:$0xf]
        %v370 = vld [vmem:[#allocation6 + $0x24] sm:$0xf]
        %v371 = vld [vmem:[#allocation6 + $0x30] sm:$0xf]
        %v372 = vld [vmem:[#allocation6 + $0x3c] sm:$0xf]
        %v373 = vld [vmem:[#allocation6 + $0x48] sm:$0xf]
        %v374 = vld [vmem:[#allocation6 + $0x54] sm:$0xf]
        %v375 = vld [vmem:[#allocation6 + $0x60] sm:$0xf]
        %v376 = vld [vmem:[#allocation6 + $0x6c] sm:$0xf]
        %v377 = vld [vmem:[#allocation6 + $0x78] sm:$0xf]
        %v378 = vld [vmem:[#allocation6 + $0x84] sm:$0xf]
        %v379 = vld [vmem:[#allocation6 + $0x90] sm:$0xf]
        %v380 = vld [vmem:[#allocation6 + $0x9c] sm:$0xf]
        %v381 = vld [vmem:[#allocation6 + $0xa8] sm:$0xf]
        %v382 = vld [vmem:[#allocation6 + $0xb4] sm:$0xf]
        %v383 = vld [vmem:[%s2] sm:$0x1]
        %v385 = vlaneseq
        %v386 = vshrl.u32 %v385, 7
        %v387 = vsub.s32 0, %v386
        %v388 = vrot.slane %v383, %v387
        %v406 = vunpack.c.l.b16 %v367
        %v407 = vunpack.c.l.b16 %v368
        %v408 = vunpack.c.l.b16 %v369
        %v409 = vunpack.c.l.b16 %v370
        %v410 = vunpack.c.l.b16 %v371
        %v411 = vunpack.c.l.b16 %v372
        %v412 = vunpack.c.l.b16 %v373
        %v413 = vunpack.c.l.b16 %v374
        %v414 = vunpack.c.l.b16 %v375
        %v415 = vunpack.c.l.b16 %v376
        %v416 = vunpack.c.l.b16 %v377
        %v417 = vunpack.c.l.b16 %v378
        %v418 = vunpack.c.l.b16 %v379
        %v419 = vunpack.c.l.b16 %v380
        %v420 = vunpack.c.l.b16 %v381
        %v421 = vunpack.c.l.b16 %v382
        %v422 = vpack.c.b16 %v407, %v406
        %v423 = vpack.c.b16 %v409, %v408
        %v424 = vpack.c.b16 %v411, %v410
        %v425 = vpack.c.b16 %v413, %v412
        %v426 = vpack.c.b16 %v415, %v414
        %v427 = vpack.c.b16 %v417, %v416
        %v428 = vpack.c.b16 %v419, %v418
        %v429 = vpack.c.b16 %v421, %v420
        %438 = vmatprep.subr.bf16.mxu0 0
        %439 = vmatpush1.bf16.msra.mxu0 %v422
        %440 = vmatprep.subr.bf16.mxu0 0
        %441 = vmatpush1.bf16.msra.mxu0 %v423
        %442 = vmatprep.subr.bf16.mxu0 0
        %443 = vmatpush1.bf16.msra.mxu0 %v424
        %444 = vmatprep.subr.bf16.mxu0 0
        %445 = vmatpush1.bf16.msra.mxu0 %v425
        %446 = vmatprep.subr.bf16.mxu0 0
        %447 = vmatpush1.bf16.msra.mxu0 %v426
        %448 = vmatprep.subr.bf16.mxu0 0
        %449 = vmatpush1.bf16.msra.mxu0 %v427
        %450 = vmatprep.subr.bf16.mxu0 0
        %451 = vmatpush1.bf16.msra.mxu0 %v428
        %452 = vmatprep.subr.bf16.mxu0 0
        %453 = vmatpush1.bf16.msra.mxu0 %v429
        %454 = vmatprep.subr.bf16.mxu0 0
        %455 = vmatpush1.bf16.msra.mxu0 0
        %456 = vmatprep.subr.bf16.mxu0 0
        %457 = vmatpush1.bf16.msra.mxu0 0
        %458 = vmatprep.subr.bf16.mxu0 0
        %459 = vmatpush1.bf16.msra.mxu0 0
        %460 = vmatprep.subr.bf16.mxu0 0
        %461 = vmatpush1.bf16.msra.mxu0 0
        %462 = vmatprep.subr.bf16.mxu0 0
        %463 = vmatpush1.bf16.msra.mxu0 0
        %464 = vmatprep.subr.bf16.mxu0 0
        %465 = vmatpush1.bf16.msra.mxu0 0
        %466 = vmatprep.subr.bf16.mxu0 0
        %467 = vmatpush1.bf16.msra.mxu0 0
        %468 = vmatprep.subr.bf16.mxu0 0
        %469 = vmatpush1.bf16.msra.mxu0 0
        %470 = vmatprep.mubr.bf16.mxu0 0
        %471 = vmatmul.mubr.bf16.gmra.mrb[0].mxu0 %v335
        %v472 = vpop.f32.mrb[0].mxu0
        %v473 = vadd.f32 %v388, %v472
        %v474 = vpop.f32.mrb[0].mxu0
        %v475 = vpop.f32.mrb[0].mxu0
        %v476 = vadd.f32 %v388, %v475
        %v477 = vpop.f32.mrb[0].mxu0
        %478 = vmatprep.mubr.bf16.mxu0 0
        %479 = vmatmul.mubr.bf16.gmra.mrb[0].mxu0 %v336
        %v480 = vpop.f32.mrb[0].mxu0
        %v481 = vadd.f32 %v388, %v480
        %v482 = vpop.f32.mrb[0].mxu0
        %v483 = vpop.f32.mrb[0].mxu0
        %v484 = vadd.f32 %v388, %v483
        %v485 = vpop.f32.mrb[0].mxu0
        %486 = vmatprep.mubr.bf16.mxu0 0
        %487 = vmatmul.mubr.bf16.gmra.mrb[0].mxu0 %v337
        %v488 = vpop.f32.mrb[0].mxu0
        %v489 = vadd.f32 %v388, %v488
        %v490 = vpop.f32.mrb[0].mxu0
        %v491 = vpop.f32.mrb[0].mxu0
        %v492 = vadd.f32 %v388, %v491
        %v493 = vpop.f32.mrb[0].mxu0
        %494 = vmatprep.mubr.bf16.mxu0 0
        %495 = vmatmul.mubr.bf16.gmra.mrb[0].mxu0 %v338
        %v496 = vpop.f32.mrb[0].mxu0
        %v497 = vadd.f32 %v388, %v496
        %v498 = vpop.f32.mrb[0].mxu0
        %v499 = vpop.f32.mrb[0].mxu0
        %v500 = vadd.f32 %v388, %v499
        %v501 = vpop.f32.mrb[0].mxu0
        %502 = vmatprep.mubr.bf16.mxu0 0
        %503 = vmatmul.mubr.bf16.gmra.mrb[0].mxu0 %v339
        %v504 = vpop.f32.mrb[0].mxu0
        %v505 = vadd.f32 %v388, %v504
        %v506 = vpop.f32.mrb[0].mxu0
        %v507 = vpop.f32.mrb[0].mxu0
        %v508 = vadd.f32 %v388, %v507
        %v509 = vpop.f32.mrb[0].mxu0
        %510 = vmatprep.mubr.bf16.mxu0 0
        %511 = vmatmul.mubr.bf16.gmra.mrb[0].mxu0 %v340
        %v512 = vpop.f32.mrb[0].mxu0
        %v513 = vadd.f32 %v388, %v512
        %v514 = vpop.f32.mrb[0].mxu0
        %v515 = vpop.f32.mrb[0].mxu0
        %v516 = vadd.f32 %v388, %v515
        %v517 = vpop.f32.mrb[0].mxu0
        %518 = vmatprep.mubr.bf16.mxu0 0
        %519 = vmatmul.mubr.bf16.gmra.mrb[0].mxu0 %v341
        %v520 = vpop.f32.mrb[0].mxu0
        %v521 = vadd.f32 %v388, %v520
        %v522 = vpop.f32.mrb[0].mxu0
        %v523 = vpop.f32.mrb[0].mxu0
        %v524 = vadd.f32 %v388, %v523
        %v525 = vpop.f32.mrb[0].mxu0
        %526 = vmatprep.mubr.bf16.mxu0 0
        %527 = vmatmul.mubr.bf16.gmra.mrb[0].mxu0 %v342
        %v528 = vpop.f32.mrb[0].mxu0
        %v529 = vadd.f32 %v388, %v528
        %v530 = vpop.f32.mrb[0].mxu0
        %v531 = vpop.f32.mrb[0].mxu0
        %v532 = vadd.f32 %v388, %v531
        %v533 = vpop.f32.mrb[0].mxu0
        %534 = vmatprep.mubr.bf16.mxu0 0
        %535 = vmatmul.mubr.bf16.gmra.mrb[0].mxu0 %v343
        %v536 = vpop.f32.mrb[0].mxu0
        %v537 = vadd.f32 %v388, %v536
        %v538 = vpop.f32.mrb[0].mxu0
        %v539 = vpop.f32.mrb[0].mxu0
        %v540 = vadd.f32 %v388, %v539
        %v541 = vpop.f32.mrb[0].mxu0
        %542 = vmatprep.mubr.bf16.mxu0 0
        %543 = vmatmul.mubr.bf16.gmra.mrb[0].mxu0 %v344
        %v544 = vpop.f32.mrb[0].mxu0
        %v545 = vadd.f32 %v388, %v544
        %v546 = vpop.f32.mrb[0].mxu0
        %v547 = vpop.f32.mrb[0].mxu0
        %v548 = vadd.f32 %v388, %v547
        %v549 = vpop.f32.mrb[0].mxu0
        %550 = vmatprep.mubr.bf16.mxu0 0
        %551 = vmatmul.mubr.bf16.gmra.mrb[0].mxu0 %v345
        %v552 = vpop.f32.mrb[0].mxu0
        %v553 = vadd.f32 %v388, %v552
        %v554 = vpop.f32.mrb[0].mxu0
        %v555 = vpop.f32.mrb[0].mxu0
        %v556 = vadd.f32 %v388, %v555
        %v557 = vpop.f32.mrb[0].mxu0
        %558 = vmatprep.mubr.bf16.mxu0 0
        %559 = vmatmul.mubr.bf16.gmra.mrb[0].mxu0 %v346
        %v560 = vpop.f32.mrb[0].mxu0
        %v561 = vadd.f32 %v388, %v560
        %v562 = vpop.f32.mrb[0].mxu0
        %v563 = vpop.f32.mrb[0].mxu0
        %v564 = vadd.f32 %v388, %v563
        %v565 = vpop.f32.mrb[0].mxu0
        %566 = vmatprep.mubr.bf16.mxu0 0
        %567 = vmatmul.mubr.bf16.gmra.mrb[0].mxu0 %v347
        %v568 = vpop.f32.mrb[0].mxu0
        %v569 = vadd.f32 %v388, %v568
        %v570 = vpop.f32.mrb[0].mxu0
        %v571 = vpop.f32.mrb[0].mxu0
        %v572 = vadd.f32 %v388, %v571
        %v573 = vpop.f32.mrb[0].mxu0
        %574 = vmatprep.mubr.bf16.mxu0 0
        %575 = vmatmul.mubr.bf16.gmra.mrb[0].mxu0 %v348
        %v576 = vpop.f32.mrb[0].mxu0
        %v577 = vadd.f32 %v388, %v576
        %v578 = vpop.f32.mrb[0].mxu0
        %v579 = vpop.f32.mrb[0].mxu0
        %v580 = vadd.f32 %v388, %v579
        %v581 = vpop.f32.mrb[0].mxu0
        %582 = vmatprep.mubr.bf16.mxu0 0
        %583 = vmatmul.mubr.bf16.gmra.mrb[0].mxu0 %v349
        %v584 = vpop.f32.mrb[0].mxu0
        %v585 = vadd.f32 %v388, %v584
        %v586 = vpop.f32.mrb[0].mxu0
        %v587 = vpop.f32.mrb[0].mxu0
        %v588 = vadd.f32 %v388, %v587
        %v589 = vpop.f32.mrb[0].mxu0
        %590 = vmatprep.mubr.bf16.mxu0 0
        %591 = vmatmul.mubr.bf16.gmra.mrb[0].mxu0 %v350
        %v592 = vpop.f32.mrb[0].mxu0
        %v593 = vadd.f32 %v388, %v592
        %v594 = vpop.f32.mrb[0].mxu0
        %v595 = vpop.f32.mrb[0].mxu0
        %v596 = vadd.f32 %v388, %v595
        %v597 = vpop.f32.mrb[0].mxu0
        %598 = vmatprep.mubr.bf16.mxu0 0
        %599 = vmatmul.mubr.bf16.gmra.mrb[0].mxu0 %v351
        %v600 = vpop.f32.mrb[0].mxu0
        %v601 = vadd.f32 %v388, %v600
        %v602 = vpop.f32.mrb[0].mxu0
        %v603 = vpop.f32.mrb[0].mxu0
        %v604 = vadd.f32 %v388, %v603
        %v605 = vpop.f32.mrb[0].mxu0
        %606 = vmatprep.mubr.bf16.mxu0 0
        %607 = vmatmul.mubr.bf16.gmra.mrb[0].mxu0 %v352
        %v608 = vpop.f32.mrb[0].mxu0
        %v609 = vadd.f32 %v388, %v608
        %v610 = vpop.f32.mrb[0].mxu0
        %v611 = vpop.f32.mrb[0].mxu0
        %v612 = vadd.f32 %v388, %v611
        %v613 = vpop.f32.mrb[0].mxu0
        %614 = vmatprep.mubr.bf16.mxu0 0
        %615 = vmatmul.mubr.bf16.gmra.mrb[0].mxu0 %v353
        %v616 = vpop.f32.mrb[0].mxu0
        %v617 = vadd.f32 %v388, %v616
        %v618 = vpop.f32.mrb[0].mxu0
        %v619 = vpop.f32.mrb[0].mxu0
        %v620 = vadd.f32 %v388, %v619
        %v621 = vpop.f32.mrb[0].mxu0
        %622 = vmatprep.mubr.bf16.mxu0 0
        %623 = vmatmul.mubr.bf16.gmra.mrb[0].mxu0 %v354
        %v624 = vpop.f32.mrb[0].mxu0
        %v625 = vadd.f32 %v388, %v624
        %v626 = vpop.f32.mrb[0].mxu0
        %v627 = vpop.f32.mrb[0].mxu0
        %v628 = vadd.f32 %v388, %v627
        %v629 = vpop.f32.mrb[0].mxu0
        %630 = vmatprep.mubr.bf16.mxu0 0
        %631 = vmatmul.mubr.bf16.gmra.mrb[0].mxu0 %v355
        %v632 = vpop.f32.mrb[0].mxu0
        %v633 = vadd.f32 %v388, %v632
        %v634 = vpop.f32.mrb[0].mxu0
        %v635 = vpop.f32.mrb[0].mxu0
        %v636 = vadd.f32 %v388, %v635
        %v637 = vpop.f32.mrb[0].mxu0
        %638 = vmatprep.mubr.bf16.mxu0 0
        %639 = vmatmul.mubr.bf16.gmra.mrb[0].mxu0 %v356
        %v640 = vpop.f32.mrb[0].mxu0
        %v641 = vadd.f32 %v388, %v640
        %v642 = vpop.f32.mrb[0].mxu0
        %v643 = vpop.f32.mrb[0].mxu0
        %v644 = vadd.f32 %v388, %v643
        %v645 = vpop.f32.mrb[0].mxu0
        %646 = vmatprep.mubr.bf16.mxu0 0
        %647 = vmatmul.mubr.bf16.gmra.mrb[0].mxu0 %v357
        %v648 = vpop.f32.mrb[0].mxu0
        %v649 = vadd.f32 %v388, %v648
        %v650 = vpop.f32.mrb[0].mxu0
        %v651 = vpop.f32.mrb[0].mxu0
        %v652 = vadd.f32 %v388, %v651
        %v653 = vpop.f32.mrb[0].mxu0
        %654 = vmatprep.mubr.bf16.mxu0 0
        %655 = vmatmul.mubr.bf16.gmra.mrb[0].mxu0 %v358
        %v656 = vpop.f32.mrb[0].mxu0
        %v657 = vadd.f32 %v388, %v656
        %v658 = vpop.f32.mrb[0].mxu0
        %v659 = vpop.f32.mrb[0].mxu0
        %v660 = vadd.f32 %v388, %v659
        %v661 = vpop.f32.mrb[0].mxu0
        %662 = vmatprep.mubr.bf16.mxu0 0
        %663 = vmatmul.mubr.bf16.gmra.mrb[0].mxu0 %v359
        %v664 = vpop.f32.mrb[0].mxu0
        %v665 = vadd.f32 %v388, %v664
        %v666 = vpop.f32.mrb[0].mxu0
        %v667 = vpop.f32.mrb[0].mxu0
        %v668 = vadd.f32 %v388, %v667
        %v669 = vpop.f32.mrb[0].mxu0
        %670 = vmatprep.mubr.bf16.mxu0 0
        %671 = vmatmul.mubr.bf16.gmra.mrb[0].mxu0 %v360
        %v672 = vpop.f32.mrb[0].mxu0
        %v673 = vadd.f32 %v388, %v672
        %v674 = vpop.f32.mrb[0].mxu0
        %v675 = vpop.f32.mrb[0].mxu0
        %v676 = vadd.f32 %v388, %v675
        %v677 = vpop.f32.mrb[0].mxu0
        %678 = vmatprep.mubr.bf16.mxu0 0
        %679 = vmatmul.mubr.bf16.gmra.mrb[0].mxu0 %v361
        %v680 = vpop.f32.mrb[0].mxu0
        %v681 = vadd.f32 %v388, %v680
        %v682 = vpop.f32.mrb[0].mxu0
        %v683 = vpop.f32.mrb[0].mxu0
        %v684 = vadd.f32 %v388, %v683
        %v685 = vpop.f32.mrb[0].mxu0
        %686 = vmatprep.mubr.bf16.mxu0 0
        %687 = vmatmul.mubr.bf16.gmra.mrb[0].mxu0 %v362
        %v688 = vpop.f32.mrb[0].mxu0
        %v689 = vadd.f32 %v388, %v688
        %v690 = vpop.f32.mrb[0].mxu0
        %v691 = vpop.f32.mrb[0].mxu0
        %v692 = vadd.f32 %v388, %v691
        %v693 = vpop.f32.mrb[0].mxu0
        %694 = vmatprep.mubr.bf16.mxu0 0
        %695 = vmatmul.mubr.bf16.gmra.mrb[0].mxu0 %v363
        %v696 = vpop.f32.mrb[0].mxu0
        %v697 = vadd.f32 %v388, %v696
        %v698 = vpop.f32.mrb[0].mxu0
        %v699 = vpop.f32.mrb[0].mxu0
        %v700 = vadd.f32 %v388, %v699
        %v701 = vpop.f32.mrb[0].mxu0
        %702 = vmatprep.mubr.bf16.mxu0 0
        %703 = vmatmul.mubr.bf16.gmra.mrb[0].mxu0 %v364
        %v704 = vpop.f32.mrb[0].mxu0
        %v705 = vadd.f32 %v388, %v704
        %v706 = vpop.f32.mrb[0].mxu0
        %v707 = vpop.f32.mrb[0].mxu0
        %v708 = vadd.f32 %v388, %v707
        %v709 = vpop.f32.mrb[0].mxu0
        %710 = vmatprep.mubr.bf16.mxu0 0
        %711 = vmatmul.mubr.bf16.gmra.mrb[0].mxu0 %v365
        %v712 = vpop.f32.mrb[0].mxu0
        %v713 = vadd.f32 %v388, %v712
        %v714 = vpop.f32.mrb[0].mxu0
        %v715 = vpop.f32.mrb[0].mxu0
        %v716 = vadd.f32 %v388, %v715
        %v717 = vpop.f32.mrb[0].mxu0
        %718 = vmatprep.mubr.bf16.mxu0 0
        %719 = vmatmul.mubr.bf16.gmra.mrb[0].mxu0 %v366
        %v720 = vpop.f32.mrb[0].mxu0
        %v721 = vadd.f32 %v388, %v720
        %v722 = vpop.f32.mrb[0].mxu0
        %v723 = vpop.f32.mrb[0].mxu0
        %v724 = vadd.f32 %v388, %v723
        %v725 = vpop.f32.mrb[0].mxu0
        %726 = vdwg.mxu0
        %v727 = vmax.f32 %v473, 0.0
        %v728 = vmax.f32 %v476, 0.0
        %v729 = vmax.f32 %v481, 0.0
        %v730 = vmax.f32 %v484, 0.0
        %v731 = vmax.f32 %v489, 0.0
        %v732 = vmax.f32 %v492, 0.0
        %v733 = vmax.f32 %v497, 0.0
        %v734 = vmax.f32 %v500, 0.0
        %v735 = vmax.f32 %v505, 0.0
        %v736 = vmax.f32 %v508, 0.0
        %v737 = vmax.f32 %v513, 0.0
        %v738 = vmax.f32 %v516, 0.0
        %v739 = vmax.f32 %v521, 0.0
        %v740 = vmax.f32 %v524, 0.0
        %v741 = vmax.f32 %v529, 0.0
        %v742 = vmax.f32 %v532, 0.0
        %v743 = vmax.f32 %v537, 0.0
        %v744 = vmax.f32 %v540, 0.0
        %v745 = vmax.f32 %v545, 0.0
        %v746 = vmax.f32 %v548, 0.0
        %v747 = vmax.f32 %v553, 0.0
        %v748 = vmax.f32 %v556, 0.0
        %v749 = vmax.f32 %v561, 0.0
        %v750 = vmax.f32 %v564, 0.0
        %v751 = vmax.f32 %v569, 0.0
        %v752 = vmax.f32 %v572, 0.0
        %v753 = vmax.f32 %v577, 0.0
        %v754 = vmax.f32 %v580, 0.0
        %v755 = vmax.f32 %v585, 0.0
        %v756 = vmax.f32 %v588, 0.0
        %v757 = vmax.f32 %v593, 0.0
        %v758 = vmax.f32 %v596, 0.0
        %v759 = vmax.f32 %v601, 0.0
        %v760 = vmax.f32 %v604, 0.0
        %v761 = vmax.f32 %v609, 0.0
        %v762 = vmax.f32 %v612, 0.0
        %v763 = vmax.f32 %v617, 0.0
        %v764 = vmax.f32 %v620, 0.0
        %v765 = vmax.f32 %v625, 0.0
        %v766 = vmax.f32 %v628, 0.0
        %v767 = vmax.f32 %v633, 0.0
        %v768 = vmax.f32 %v636, 0.0
        %v769 = vmax.f32 %v641, 0.0
        %v770 = vmax.f32 %v644, 0.0
        %v771 = vmax.f32 %v649, 0.0
        %v772 = vmax.f32 %v652, 0.0
        %v773 = vmax.f32 %v657, 0.0
        %v774 = vmax.f32 %v660, 0.0
        %v775 = vmax.f32 %v665, 0.0
        %v776 = vmax.f32 %v668, 0.0
        %v777 = vmax.f32 %v673, 0.0
        %v778 = vmax.f32 %v676, 0.0
        %v779 = vmax.f32 %v681, 0.0
        %v780 = vmax.f32 %v684, 0.0
        %v781 = vmax.f32 %v689, 0.0
        %v782 = vmax.f32 %v692, 0.0
        %v783 = vmax.f32 %v697, 0.0
        %v784 = vmax.f32 %v700, 0.0
        %v785 = vmax.f32 %v705, 0.0
        %v786 = vmax.f32 %v708, 0.0
        %v787 = vmax.f32 %v713, 0.0
        %v788 = vmax.f32 %v716, 0.0
        %v789 = vmax.f32 %v721, 0.0
        %v790 = vmax.f32 %v724, 0.0
        %v791 = vpack.c.bf16 %v728, %v727
        %v792 = vpack.c.bf16 %v730, %v729
        %v793 = vpack.c.bf16 %v732, %v731
        %v794 = vpack.c.bf16 %v734, %v733
        %v795 = vpack.c.bf16 %v736, %v735
        %v796 = vpack.c.bf16 %v738, %v737
        %v797 = vpack.c.bf16 %v740, %v739
        %v798 = vpack.c.bf16 %v742, %v741
        %v799 = vpack.c.bf16 %v744, %v743
        %v800 = vpack.c.bf16 %v746, %v745
        %v801 = vpack.c.bf16 %v748, %v747
        %v802 = vpack.c.bf16 %v750, %v749
        %v803 = vpack.c.bf16 %v752, %v751
        %v804 = vpack.c.bf16 %v754, %v753
        %v805 = vpack.c.bf16 %v756, %v755
        %v806 = vpack.c.bf16 %v758, %v757
        %v807 = vpack.c.bf16 %v760, %v759
        %v808 = vpack.c.bf16 %v762, %v761
        %v809 = vpack.c.bf16 %v764, %v763
        %v810 = vpack.c.bf16 %v766, %v765
        %v811 = vpack.c.bf16 %v768, %v767
        %v812 = vpack.c.bf16 %v770, %v769
        %v813 = vpack.c.bf16 %v772, %v771
        %v814 = vpack.c.bf16 %v774, %v773
        %v815 = vpack.c.bf16 %v776, %v775
        %v816 = vpack.c.bf16 %v778, %v777
        %v817 = vpack.c.bf16 %v780, %v779
        %v818 = vpack.c.bf16 %v782, %v781
        %v819 = vpack.c.bf16 %v784, %v783
        %v820 = vpack.c.bf16 %v786, %v785
        %v821 = vpack.c.bf16 %v788, %v787
        %v822 = vpack.c.bf16 %v790, %v789
        %v823 = vld [vmem:[#allocation6 + $0x4] sm:$0xf]
        %v824 = vld [vmem:[#allocation6 + $0x10] sm:$0xf]
        %v825 = vld [vmem:[#allocation6 + $0x1c] sm:$0xf]
        %v826 = vld [vmem:[#allocation6 + $0x28] sm:$0xf]
        %v827 = vld [vmem:[#allocation6 + $0x34] sm:$0xf]
        %v828 = vld [vmem:[#allocation6 + $0x40] sm:$0xf]
        %v829 = vld [vmem:[#allocation6 + $0x4c] sm:$0xf]
        %v830 = vld [vmem:[#allocation6 + $0x58] sm:$0xf]
        %v831 = vld [vmem:[#allocation6 + $0x64] sm:$0xf]
        %v832 = vld [vmem:[#allocation6 + $0x70] sm:$0xf]
        %v833 = vld [vmem:[#allocation6 + $0x7c] sm:$0xf]
        %v834 = vld [vmem:[#allocation6 + $0x88] sm:$0xf]
        %v835 = vld [vmem:[#allocation6 + $0x94] sm:$0xf]
        %v836 = vld [vmem:[#allocation6 + $0xa0] sm:$0xf]
        %v837 = vld [vmem:[#allocation6 + $0xac] sm:$0xf]
        %v838 = vld [vmem:[#allocation6 + $0xb8] sm:$0xf]
        %v839 = vld [vmem:[%s2 + $0x1] sm:$0x1]
        %v841 = vlaneseq
        %v842 = vshrl.u32 %v841, 7
        %v843 = vsub.s32 0, %v842
        %v844 = vrot.slane %v839, %v843
        %v862 = vunpack.c.l.b16 %v823
        %v863 = vunpack.c.l.b16 %v824
        %v864 = vunpack.c.l.b16 %v825
        %v865 = vunpack.c.l.b16 %v826
        %v866 = vunpack.c.l.b16 %v827
        %v867 = vunpack.c.l.b16 %v828
        %v868 = vunpack.c.l.b16 %v829
        %v869 = vunpack.c.l.b16 %v830
        %v870 = vunpack.c.l.b16 %v831
        %v871 = vunpack.c.l.b16 %v832
        %v872 = vunpack.c.l.b16 %v833
        %v873 = vunpack.c.l.b16 %v834
        %v874 = vunpack.c.l.b16 %v835
        %v875 = vunpack.c.l.b16 %v836
        %v876 = vunpack.c.l.b16 %v837
        %v877 = vunpack.c.l.b16 %v838
        %v878 = vpack.c.b16 %v863, %v862
        %v879 = vpack.c.b16 %v865, %v864
        %v880 = vpack.c.b16 %v867, %v866
        %v881 = vpack.c.b16 %v869, %v868
        %v882 = vpack.c.b16 %v871, %v870
        %v883 = vpack.c.b16 %v873, %v872
        %v884 = vpack.c.b16 %v875, %v874
        %v885 = vpack.c.b16 %v877, %v876
        %894 = vmatprep.subr.bf16.mxu0 0
        %895 = vmatpush1.bf16.msra.mxu0 %v878
        %896 = vmatprep.subr.bf16.mxu0 0
        %897 = vmatpush1.bf16.msra.mxu0 %v879
        %898 = vmatprep.subr.bf16.mxu0 0
        %899 = vmatpush1.bf16.msra.mxu0 %v880
        %900 = vmatprep.subr.bf16.mxu0 0
        %901 = vmatpush1.bf16.msra.mxu0 %v881
        %902 = vmatprep.subr.bf16.mxu0 0
        %903 = vmatpush1.bf16.msra.mxu0 %v882
        %904 = vmatprep.subr.bf16.mxu0 0
        %905 = vmatpush1.bf16.msra.mxu0 %v883
        %906 = vmatprep.subr.bf16.mxu0 0
        %907 = vmatpush1.bf16.msra.mxu0 %v884
        %908 = vmatprep.subr.bf16.mxu0 0
        %909 = vmatpush1.bf16.msra.mxu0 %v885
        %910 = vmatprep.subr.bf16.mxu0 0
        %911 = vmatpush1.bf16.msra.mxu0 0
        %912 = vmatprep.subr.bf16.mxu0 0
        %913 = vmatpush1.bf16.msra.mxu0 0
        %914 = vmatprep.subr.bf16.mxu0 0
        %915 = vmatpush1.bf16.msra.mxu0 0
        %916 = vmatprep.subr.bf16.mxu0 0
        %917 = vmatpush1.bf16.msra.mxu0 0
        %918 = vmatprep.subr.bf16.mxu0 0
        %919 = vmatpush1.bf16.msra.mxu0 0
        %920 = vmatprep.subr.bf16.mxu0 0
        %921 = vmatpush1.bf16.msra.mxu0 0
        %922 = vmatprep.subr.bf16.mxu0 0
        %923 = vmatpush1.bf16.msra.mxu0 0
        %924 = vmatprep.subr.bf16.mxu0 0
        %925 = vmatpush1.bf16.msra.mxu0 0
        %926 = vmatprep.mubr.bf16.mxu0 0
        %927 = vmatmul.mubr.bf16.gmra.mrb[0].mxu0 %v791
        %v928 = vpop.f32.mrb[0].mxu0
        %v929 = vadd.f32 %v844, %v928
        %v930 = vpop.f32.mrb[0].mxu0
        %v931 = vpop.f32.mrb[0].mxu0
        %v932 = vadd.f32 %v844, %v931
        %v933 = vpop.f32.mrb[0].mxu0
        %934 = vmatprep.mubr.bf16.mxu0 0
        %935 = vmatmul.mubr.bf16.gmra.mrb[0].mxu0 %v792
        %v936 = vpop.f32.mrb[0].mxu0
        %v937 = vadd.f32 %v844, %v936
        %v938 = vpop.f32.mrb[0].mxu0
        %v939 = vpop.f32.mrb[0].mxu0
        %v940 = vadd.f32 %v844, %v939
        %v941 = vpop.f32.mrb[0].mxu0
        %942 = vmatprep.mubr.bf16.mxu0 0
        %943 = vmatmul.mubr.bf16.gmra.mrb[0].mxu0 %v793
        %v944 = vpop.f32.mrb[0].mxu0
        %v945 = vadd.f32 %v844, %v944
        %v946 = vpop.f32.mrb[0].mxu0
        %v947 = vpop.f32.mrb[0].mxu0
        %v948 = vadd.f32 %v844, %v947
        %v949 = vpop.f32.mrb[0].mxu0
        %950 = vmatprep.mubr.bf16.mxu0 0
        %951 = vmatmul.mubr.bf16.gmra.mrb[0].mxu0 %v794
        %v952 = vpop.f32.mrb[0].mxu0
        %v953 = vadd.f32 %v844, %v952
        %v954 = vpop.f32.mrb[0].mxu0
        %v955 = vpop.f32.mrb[0].mxu0
        %v956 = vadd.f32 %v844, %v955
        %v957 = vpop.f32.mrb[0].mxu0
        %958 = vmatprep.mubr.bf16.mxu0 0
        %959 = vmatmul.mubr.bf16.gmra.mrb[0].mxu0 %v795
        %v960 = vpop.f32.mrb[0].mxu0
        %v961 = vadd.f32 %v844, %v960
        %v962 = vpop.f32.mrb[0].mxu0
        %v963 = vpop.f32.mrb[0].mxu0
        %v964 = vadd.f32 %v844, %v963
        %v965 = vpop.f32.mrb[0].mxu0
        %966 = vmatprep.mubr.bf16.mxu0 0
        %967 = vmatmul.mubr.bf16.gmra.mrb[0].mxu0 %v796
        %v968 = vpop.f32.mrb[0].mxu0
        %v969 = vadd.f32 %v844, %v968
        %v970 = vpop.f32.mrb[0].mxu0
        %v971 = vpop.f32.mrb[0].mxu0
        %v972 = vadd.f32 %v844, %v971
        %v973 = vpop.f32.mrb[0].mxu0
        %974 = vmatprep.mubr.bf16.mxu0 0
        %975 = vmatmul.mubr.bf16.gmra.mrb[0].mxu0 %v797
        %v976 = vpop.f32.mrb[0].mxu0
        %v977 = vadd.f32 %v844, %v976
        %v978 = vpop.f32.mrb[0].mxu0
        %v979 = vpop.f32.mrb[0].mxu0
        %v980 = vadd.f32 %v844, %v979
        %v981 = vpop.f32.mrb[0].mxu0
        %982 = vmatprep.mubr.bf16.mxu0 0
        %983 = vmatmul.mubr.bf16.gmra.mrb[0].mxu0 %v798
        %v984 = vpop.f32.mrb[0].mxu0
        %v985 = vadd.f32 %v844, %v984
        %v986 = vpop.f32.mrb[0].mxu0
        %v987 = vpop.f32.mrb[0].mxu0
        %v988 = vadd.f32 %v844, %v987
        %v989 = vpop.f32.mrb[0].mxu0
        %990 = vmatprep.mubr.bf16.mxu0 0
        %991 = vmatmul.mubr.bf16.gmra.mrb[0].mxu0 %v799
        %v992 = vpop.f32.mrb[0].mxu0
        %v993 = vadd.f32 %v844, %v992
        %v994 = vpop.f32.mrb[0].mxu0
        %v995 = vpop.f32.mrb[0].mxu0
        %v996 = vadd.f32 %v844, %v995
        %v997 = vpop.f32.mrb[0].mxu0
        %998 = vmatprep.mubr.bf16.mxu0 0
        %999 = vmatmul.mubr.bf16.gmra.mrb[0].mxu0 %v800
        %v1000 = vpop.f32.mrb[0].mxu0
        %v1001 = vadd.f32 %v844, %v1000
        %v1002 = vpop.f32.mrb[0].mxu0
        %v1003 = vpop.f32.mrb[0].mxu0
        %v1004 = vadd.f32 %v844, %v1003
        %v1005 = vpop.f32.mrb[0].mxu0
        %1006 = vmatprep.mubr.bf16.mxu0 0
        %1007 = vmatmul.mubr.bf16.gmra.mrb[0].mxu0 %v801
        %v1008 = vpop.f32.mrb[0].mxu0
        %v1009 = vadd.f32 %v844, %v1008
        %v1010 = vpop.f32.mrb[0].mxu0
        %v1011 = vpop.f32.mrb[0].mxu0
        %v1012 = vadd.f32 %v844, %v1011
        %v1013 = vpop.f32.mrb[0].mxu0
        %1014 = vmatprep.mubr.bf16.mxu0 0
        %1015 = vmatmul.mubr.bf16.gmra.mrb[0].mxu0 %v802
        %v1016 = vpop.f32.mrb[0].mxu0
        %v1017 = vadd.f32 %v844, %v1016
        %v1018 = vpop.f32.mrb[0].mxu0
        %v1019 = vpop.f32.mrb[0].mxu0
        %v1020 = vadd.f32 %v844, %v1019
        %v1021 = vpop.f32.mrb[0].mxu0
        %1022 = vmatprep.mubr.bf16.mxu0 0
        %1023 = vmatmul.mubr.bf16.gmra.mrb[0].mxu0 %v803
        %v1024 = vpop.f32.mrb[0].mxu0
        %v1025 = vadd.f32 %v844, %v1024
        %v1026 = vpop.f32.mrb[0].mxu0
        %v1027 = vpop.f32.mrb[0].mxu0
        %v1028 = vadd.f32 %v844, %v1027
        %v1029 = vpop.f32.mrb[0].mxu0
        %1030 = vmatprep.mubr.bf16.mxu0 0
        %1031 = vmatmul.mubr.bf16.gmra.mrb[0].mxu0 %v804
        %v1032 = vpop.f32.mrb[0].mxu0
        %v1033 = vadd.f32 %v844, %v1032
        %v1034 = vpop.f32.mrb[0].mxu0
        %v1035 = vpop.f32.mrb[0].mxu0
        %v1036 = vadd.f32 %v844, %v1035
        %v1037 = vpop.f32.mrb[0].mxu0
        %1038 = vmatprep.mubr.bf16.mxu0 0
        %1039 = vmatmul.mubr.bf16.gmra.mrb[0].mxu0 %v805
        %v1040 = vpop.f32.mrb[0].mxu0
        %v1041 = vadd.f32 %v844, %v1040
        %v1042 = vpop.f32.mrb[0].mxu0
        %v1043 = vpop.f32.mrb[0].mxu0
        %v1044 = vadd.f32 %v844, %v1043
        %v1045 = vpop.f32.mrb[0].mxu0
        %1046 = vmatprep.mubr.bf16.mxu0 0
        %1047 = vmatmul.mubr.bf16.gmra.mrb[0].mxu0 %v806
        %v1048 = vpop.f32.mrb[0].mxu0
        %v1049 = vadd.f32 %v844, %v1048
        %v1050 = vpop.f32.mrb[0].mxu0
        %v1051 = vpop.f32.mrb[0].mxu0
        %v1052 = vadd.f32 %v844, %v1051
        %v1053 = vpop.f32.mrb[0].mxu0
        %1054 = vmatprep.mubr.bf16.mxu0 0
        %1055 = vmatmul.mubr.bf16.gmra.mrb[0].mxu0 %v807
        %v1056 = vpop.f32.mrb[0].mxu0
        %v1057 = vadd.f32 %v844, %v1056
        %v1058 = vpop.f32.mrb[0].mxu0
        %v1059 = vpop.f32.mrb[0].mxu0
        %v1060 = vadd.f32 %v844, %v1059
        %v1061 = vpop.f32.mrb[0].mxu0
        %1062 = vmatprep.mubr.bf16.mxu0 0
        %1063 = vmatmul.mubr.bf16.gmra.mrb[0].mxu0 %v808
        %v1064 = vpop.f32.mrb[0].mxu0
        %v1065 = vadd.f32 %v844, %v1064
        %v1066 = vpop.f32.mrb[0].mxu0
        %v1067 = vpop.f32.mrb[0].mxu0
        %v1068 = vadd.f32 %v844, %v1067
        %v1069 = vpop.f32.mrb[0].mxu0
        %1070 = vmatprep.mubr.bf16.mxu0 0
        %1071 = vmatmul.mubr.bf16.gmra.mrb[0].mxu0 %v809
        %v1072 = vpop.f32.mrb[0].mxu0
        %v1073 = vadd.f32 %v844, %v1072
        %v1074 = vpop.f32.mrb[0].mxu0
        %v1075 = vpop.f32.mrb[0].mxu0
        %v1076 = vadd.f32 %v844, %v1075
        %v1077 = vpop.f32.mrb[0].mxu0
        %1078 = vmatprep.mubr.bf16.mxu0 0
        %1079 = vmatmul.mubr.bf16.gmra.mrb[0].mxu0 %v810
        %v1080 = vpop.f32.mrb[0].mxu0
        %v1081 = vadd.f32 %v844, %v1080
        %v1082 = vpop.f32.mrb[0].mxu0
        %v1083 = vpop.f32.mrb[0].mxu0
        %v1084 = vadd.f32 %v844, %v1083
        %v1085 = vpop.f32.mrb[0].mxu0
        %1086 = vmatprep.mubr.bf16.mxu0 0
        %1087 = vmatmul.mubr.bf16.gmra.mrb[0].mxu0 %v811
        %v1088 = vpop.f32.mrb[0].mxu0
        %v1089 = vadd.f32 %v844, %v1088
        %v1090 = vpop.f32.mrb[0].mxu0
        %v1091 = vpop.f32.mrb[0].mxu0
        %v1092 = vadd.f32 %v844, %v1091
        %v1093 = vpop.f32.mrb[0].mxu0
        %1094 = vmatprep.mubr.bf16.mxu0 0
        %1095 = vmatmul.mubr.bf16.gmra.mrb[0].mxu0 %v812
        %v1096 = vpop.f32.mrb[0].mxu0
        %v1097 = vadd.f32 %v844, %v1096
        %v1098 = vpop.f32.mrb[0].mxu0
        %v1099 = vpop.f32.mrb[0].mxu0
        %v1100 = vadd.f32 %v844, %v1099
        %v1101 = vpop.f32.mrb[0].mxu0
        %1102 = vmatprep.mubr.bf16.mxu0 0
        %1103 = vmatmul.mubr.bf16.gmra.mrb[0].mxu0 %v813
        %v1104 = vpop.f32.mrb[0].mxu0
        %v1105 = vadd.f32 %v844, %v1104
        %v1106 = vpop.f32.mrb[0].mxu0
        %v1107 = vpop.f32.mrb[0].mxu0
        %v1108 = vadd.f32 %v844, %v1107
        %v1109 = vpop.f32.mrb[0].mxu0
        %1110 = vmatprep.mubr.bf16.mxu0 0
        %1111 = vmatmul.mubr.bf16.gmra.mrb[0].mxu0 %v814
        %v1112 = vpop.f32.mrb[0].mxu0
        %v1113 = vadd.f32 %v844, %v1112
        %v1114 = vpop.f32.mrb[0].mxu0
        %v1115 = vpop.f32.mrb[0].mxu0
        %v1116 = vadd.f32 %v844, %v1115
        %v1117 = vpop.f32.mrb[0].mxu0
        %1118 = vmatprep.mubr.bf16.mxu0 0
        %1119 = vmatmul.mubr.bf16.gmra.mrb[0].mxu0 %v815
        %v1120 = vpop.f32.mrb[0].mxu0
        %v1121 = vadd.f32 %v844, %v1120
        %v1122 = vpop.f32.mrb[0].mxu0
        %v1123 = vpop.f32.mrb[0].mxu0
        %v1124 = vadd.f32 %v844, %v1123
        %v1125 = vpop.f32.mrb[0].mxu0
        %1126 = vmatprep.mubr.bf16.mxu0 0
        %1127 = vmatmul.mubr.bf16.gmra.mrb[0].mxu0 %v816
        %v1128 = vpop.f32.mrb[0].mxu0
        %v1129 = vadd.f32 %v844, %v1128
        %v1130 = vpop.f32.mrb[0].mxu0
        %v1131 = vpop.f32.mrb[0].mxu0
        %v1132 = vadd.f32 %v844, %v1131
        %v1133 = vpop.f32.mrb[0].mxu0
        %1134 = vmatprep.mubr.bf16.mxu0 0
        %1135 = vmatmul.mubr.bf16.gmra.mrb[0].mxu0 %v817
        %v1136 = vpop.f32.mrb[0].mxu0
        %v1137 = vadd.f32 %v844, %v1136
        %v1138 = vpop.f32.mrb[0].mxu0
        %v1139 = vpop.f32.mrb[0].mxu0
        %v1140 = vadd.f32 %v844, %v1139
        %v1141 = vpop.f32.mrb[0].mxu0
        %1142 = vmatprep.mubr.bf16.mxu0 0
        %1143 = vmatmul.mubr.bf16.gmra.mrb[0].mxu0 %v818
        %v1144 = vpop.f32.mrb[0].mxu0
        %v1145 = vadd.f32 %v844, %v1144
        %v1146 = vpop.f32.mrb[0].mxu0
        %v1147 = vpop.f32.mrb[0].mxu0
        %v1148 = vadd.f32 %v844, %v1147
        %v1149 = vpop.f32.mrb[0].mxu0
        %1150 = vmatprep.mubr.bf16.mxu0 0
        %1151 = vmatmul.mubr.bf16.gmra.mrb[0].mxu0 %v819
        %v1152 = vpop.f32.mrb[0].mxu0
        %v1153 = vadd.f32 %v844, %v1152
        %v1154 = vpop.f32.mrb[0].mxu0
        %v1155 = vpop.f32.mrb[0].mxu0
        %v1156 = vadd.f32 %v844, %v1155
        %v1157 = vpop.f32.mrb[0].mxu0
        %1158 = vmatprep.mubr.bf16.mxu0 0
        %1159 = vmatmul.mubr.bf16.gmra.mrb[0].mxu0 %v820
        %v1160 = vpop.f32.mrb[0].mxu0
        %v1161 = vadd.f32 %v844, %v1160
        %v1162 = vpop.f32.mrb[0].mxu0
        %v1163 = vpop.f32.mrb[0].mxu0
        %v1164 = vadd.f32 %v844, %v1163
        %v1165 = vpop.f32.mrb[0].mxu0
        %1166 = vmatprep.mubr.bf16.mxu0 0
        %1167 = vmatmul.mubr.bf16.gmra.mrb[0].mxu0 %v821
        %v1168 = vpop.f32.mrb[0].mxu0
        %v1169 = vadd.f32 %v844, %v1168
        %v1170 = vpop.f32.mrb[0].mxu0
        %v1171 = vpop.f32.mrb[0].mxu0
        %v1172 = vadd.f32 %v844, %v1171
        %v1173 = vpop.f32.mrb[0].mxu0
        %1174 = vmatprep.mubr.bf16.mxu0 0
        %1175 = vmatmul.mubr.bf16.gmra.mrb[0].mxu0 %v822
        %v1176 = vpop.f32.mrb[0].mxu0
        %v1177 = vadd.f32 %v844, %v1176
        %v1178 = vpop.f32.mrb[0].mxu0
        %v1179 = vpop.f32.mrb[0].mxu0
        %v1180 = vadd.f32 %v844, %v1179
        %v1181 = vpop.f32.mrb[0].mxu0
        %1182 = vdwg.mxu0
        %v1183 = vmax.f32 %v929, 0.0
        %v1184 = vmax.f32 %v932, 0.0
        %v1185 = vmax.f32 %v937, 0.0
        %v1186 = vmax.f32 %v940, 0.0
        %v1187 = vmax.f32 %v945, 0.0
        %v1188 = vmax.f32 %v948, 0.0
        %v1189 = vmax.f32 %v953, 0.0
        %v1190 = vmax.f32 %v956, 0.0
        %v1191 = vmax.f32 %v961, 0.0
        %v1192 = vmax.f32 %v964, 0.0
        %v1193 = vmax.f32 %v969, 0.0
        %v1194 = vmax.f32 %v972, 0.0
        %v1195 = vmax.f32 %v977, 0.0
        %v1196 = vmax.f32 %v980, 0.0
        %v1197 = vmax.f32 %v985, 0.0
        %v1198 = vmax.f32 %v988, 0.0
        %v1199 = vmax.f32 %v993, 0.0
        %v1200 = vmax.f32 %v996, 0.0
        %v1201 = vmax.f32 %v1001, 0.0
        %v1202 = vmax.f32 %v1004, 0.0
        %v1203 = vmax.f32 %v1009, 0.0
        %v1204 = vmax.f32 %v1012, 0.0
        %v1205 = vmax.f32 %v1017, 0.0
        %v1206 = vmax.f32 %v1020, 0.0
        %v1207 = vmax.f32 %v1025, 0.0
        %v1208 = vmax.f32 %v1028, 0.0
        %v1209 = vmax.f32 %v1033, 0.0
        %v1210 = vmax.f32 %v1036, 0.0
        %v1211 = vmax.f32 %v1041, 0.0
        %v1212 = vmax.f32 %v1044, 0.0
        %v1213 = vmax.f32 %v1049, 0.0
        %v1214 = vmax.f32 %v1052, 0.0
        %v1215 = vmax.f32 %v1057, 0.0
        %v1216 = vmax.f32 %v1060, 0.0
        %v1217 = vmax.f32 %v1065, 0.0
        %v1218 = vmax.f32 %v1068, 0.0
        %v1219 = vmax.f32 %v1073, 0.0
        %v1220 = vmax.f32 %v1076, 0.0
        %v1221 = vmax.f32 %v1081, 0.0
        %v1222 = vmax.f32 %v1084, 0.0
        %v1223 = vmax.f32 %v1089, 0.0
        %v1224 = vmax.f32 %v1092, 0.0
        %v1225 = vmax.f32 %v1097, 0.0
        %v1226 = vmax.f32 %v1100, 0.0
        %v1227 = vmax.f32 %v1105, 0.0
        %v1228 = vmax.f32 %v1108, 0.0
        %v1229 = vmax.f32 %v1113, 0.0
        %v1230 = vmax.f32 %v1116, 0.0
        %v1231 = vmax.f32 %v1121, 0.0
        %v1232 = vmax.f32 %v1124, 0.0
        %v1233 = vmax.f32 %v1129, 0.0
        %v1234 = vmax.f32 %v1132, 0.0
        %v1235 = vmax.f32 %v1137, 0.0
        %v1236 = vmax.f32 %v1140, 0.0
        %v1237 = vmax.f32 %v1145, 0.0
        %v1238 = vmax.f32 %v1148, 0.0
        %v1239 = vmax.f32 %v1153, 0.0
        %v1240 = vmax.f32 %v1156, 0.0
        %v1241 = vmax.f32 %v1161, 0.0
        %v1242 = vmax.f32 %v1164, 0.0
        %v1243 = vmax.f32 %v1169, 0.0
        %v1244 = vmax.f32 %v1172, 0.0
        %v1245 = vmax.f32 %v1177, 0.0
        %v1246 = vmax.f32 %v1180, 0.0
        %v1247 = vpack.c.bf16 %v1184, %v1183
        %v1248 = vpack.c.bf16 %v1186, %v1185
        %v1249 = vpack.c.bf16 %v1188, %v1187
        %v1250 = vpack.c.bf16 %v1190, %v1189
        %v1251 = vpack.c.bf16 %v1192, %v1191
        %v1252 = vpack.c.bf16 %v1194, %v1193
        %v1253 = vpack.c.bf16 %v1196, %v1195
        %v1254 = vpack.c.bf16 %v1198, %v1197
        %v1255 = vpack.c.bf16 %v1200, %v1199
        %v1256 = vpack.c.bf16 %v1202, %v1201
        %v1257 = vpack.c.bf16 %v1204, %v1203
        %v1258 = vpack.c.bf16 %v1206, %v1205
        %v1259 = vpack.c.bf16 %v1208, %v1207
        %v1260 = vpack.c.bf16 %v1210, %v1209
        %v1261 = vpack.c.bf16 %v1212, %v1211
        %v1262 = vpack.c.bf16 %v1214, %v1213
        %v1263 = vpack.c.bf16 %v1216, %v1215
        %v1264 = vpack.c.bf16 %v1218, %v1217
        %v1265 = vpack.c.bf16 %v1220, %v1219
        %v1266 = vpack.c.bf16 %v1222, %v1221
        %v1267 = vpack.c.bf16 %v1224, %v1223
        %v1268 = vpack.c.bf16 %v1226, %v1225
        %v1269 = vpack.c.bf16 %v1228, %v1227
        %v1270 = vpack.c.bf16 %v1230, %v1229
        %v1271 = vpack.c.bf16 %v1232, %v1231
        %v1272 = vpack.c.bf16 %v1234, %v1233
        %v1273 = vpack.c.bf16 %v1236, %v1235
        %v1274 = vpack.c.bf16 %v1238, %v1237
        %v1275 = vpack.c.bf16 %v1240, %v1239
        %v1276 = vpack.c.bf16 %v1242, %v1241
        %v1277 = vpack.c.bf16 %v1244, %v1243
        %v1278 = vpack.c.bf16 %v1246, %v1245
        %v1279 = vld [vmem:[#allocation6 + $0x8] sm:$0xf]
        %v1280 = vld [vmem:[#allocation6 + $0x14] sm:$0xf]
        %v1281 = vld [vmem:[#allocation6 + $0x20] sm:$0xf]
        %v1282 = vld [vmem:[#allocation6 + $0x2c] sm:$0xf]
        %v1283 = vld [vmem:[#allocation6 + $0x38] sm:$0xf]
        %v1284 = vld [vmem:[#allocation6 + $0x44] sm:$0xf]
        %v1285 = vld [vmem:[#allocation6 + $0x50] sm:$0xf]
        %v1286 = vld [vmem:[#allocation6 + $0x5c] sm:$0xf]
        %v1287 = vld [vmem:[#allocation6 + $0x68] sm:$0xf]
        %v1288 = vld [vmem:[#allocation6 + $0x74] sm:$0xf]
        %v1289 = vld [vmem:[#allocation6 + $0x80] sm:$0xf]
        %v1290 = vld [vmem:[#allocation6 + $0x8c] sm:$0xf]
        %v1291 = vld [vmem:[#allocation6 + $0x98] sm:$0xf]
        %v1292 = vld [vmem:[#allocation6 + $0xa4] sm:$0xf]
        %v1293 = vld [vmem:[#allocation6 + $0xb0] sm:$0xf]
        %v1294 = vld [vmem:[#allocation6 + $0xbc] sm:$0xf]
        %v1295 = vld [vmem:[%s2 + $0x2] sm:$0x1]
        %v1297 = vlaneseq
        %v1298 = vshrl.u32 %v1297, 7
        %v1299 = vsub.s32 0, %v1298
        %v1300 = vrot.slane %v1295, %v1299
        %v1318 = vunpack.c.l.b16 %v1279
        %v1319 = vunpack.c.l.b16 %v1280
        %v1320 = vunpack.c.l.b16 %v1281
        %v1321 = vunpack.c.l.b16 %v1282
        %v1322 = vunpack.c.l.b16 %v1283
        %v1323 = vunpack.c.l.b16 %v1284
        %v1324 = vunpack.c.l.b16 %v1285
        %v1325 = vunpack.c.l.b16 %v1286
        %v1326 = vunpack.c.l.b16 %v1287
        %v1327 = vunpack.c.l.b16 %v1288
        %v1328 = vunpack.c.l.b16 %v1289
        %v1329 = vunpack.c.l.b16 %v1290
        %v1330 = vunpack.c.l.b16 %v1291
        %v1331 = vunpack.c.l.b16 %v1292
        %v1332 = vunpack.c.l.b16 %v1293
        %v1333 = vunpack.c.l.b16 %v1294
        %v1334 = vpack.c.b16 %v1319, %v1318
        %v1335 = vpack.c.b16 %v1321, %v1320
        %v1336 = vpack.c.b16 %v1323, %v1322
        %v1337 = vpack.c.b16 %v1325, %v1324
        %v1338 = vpack.c.b16 %v1327, %v1326
        %v1339 = vpack.c.b16 %v1329, %v1328
        %v1340 = vpack.c.b16 %v1331, %v1330
        %v1341 = vpack.c.b16 %v1333, %v1332
        %1350 = vmatprep.subr.bf16.mxu0 0
        %1351 = vmatpush1.bf16.msra.mxu0 %v1334
        %1352 = vmatprep.subr.bf16.mxu0 0
        %1353 = vmatpush1.bf16.msra.mxu0 %v1335
        %1354 = vmatprep.subr.bf16.mxu0 0
        %1355 = vmatpush1.bf16.msra.mxu0 %v1336
        %1356 = vmatprep.subr.bf16.mxu0 0
        %1357 = vmatpush1.bf16.msra.mxu0 %v1337
        %1358 = vmatprep.subr.bf16.mxu0 0
        %1359 = vmatpush1.bf16.msra.mxu0 %v1338
        %1360 = vmatprep.subr.bf16.mxu0 0
        %1361 = vmatpush1.bf16.msra.mxu0 %v1339
        %1362 = vmatprep.subr.bf16.mxu0 0
        %1363 = vmatpush1.bf16.msra.mxu0 %v1340
        %1364 = vmatprep.subr.bf16.mxu0 0
        %1365 = vmatpush1.bf16.msra.mxu0 %v1341
        %1366 = vmatprep.subr.bf16.mxu0 0
        %1367 = vmatpush1.bf16.msra.mxu0 0
        %1368 = vmatprep.subr.bf16.mxu0 0
        %1369 = vmatpush1.bf16.msra.mxu0 0
        %1370 = vmatprep.subr.bf16.mxu0 0
        %1371 = vmatpush1.bf16.msra.mxu0 0
        %1372 = vmatprep.subr.bf16.mxu0 0
        %1373 = vmatpush1.bf16.msra.mxu0 0
        %1374 = vmatprep.subr.bf16.mxu0 0
        %1375 = vmatpush1.bf16.msra.mxu0 0
        %1376 = vmatprep.subr.bf16.mxu0 0
        %1377 = vmatpush1.bf16.msra.mxu0 0
        %1378 = vmatprep.subr.bf16.mxu0 0
        %1379 = vmatpush1.bf16.msra.mxu0 0
        %1380 = vmatprep.subr.bf16.mxu0 0
        %1381 = vmatpush1.bf16.msra.mxu0 0
        %1382 = vmatprep.mubr.bf16.mxu0 0
        %1383 = vmatmul.mubr.bf16.gmra.mrb[0].mxu0 %v1247
        %v1384 = vpop.f32.mrb[0].mxu0
        %v1385 = vadd.f32 %v1300, %v1384
        %v1386 = vpop.f32.mrb[0].mxu0
        %v1387 = vpop.f32.mrb[0].mxu0
        %v1388 = vadd.f32 %v1300, %v1387
        %v1389 = vpop.f32.mrb[0].mxu0
        %1390 = vmatprep.mubr.bf16.mxu0 0
        %1391 = vmatmul.mubr.bf16.gmra.mrb[0].mxu0 %v1248
        %v1392 = vpop.f32.mrb[0].mxu0
        %v1393 = vadd.f32 %v1300, %v1392
        %v1394 = vpop.f32.mrb[0].mxu0
        %v1395 = vpop.f32.mrb[0].mxu0
        %v1396 = vadd.f32 %v1300, %v1395
        %v1397 = vpop.f32.mrb[0].mxu0
        %1398 = vmatprep.mubr.bf16.mxu0 0
        %1399 = vmatmul.mubr.bf16.gmra.mrb[0].mxu0 %v1249
        %v1400 = vpop.f32.mrb[0].mxu0
        %v1401 = vadd.f32 %v1300, %v1400
        %v1402 = vpop.f32.mrb[0].mxu0
        %v1403 = vpop.f32.mrb[0].mxu0
        %v1404 = vadd.f32 %v1300, %v1403
        %v1405 = vpop.f32.mrb[0].mxu0
        %1406 = vmatprep.mubr.bf16.mxu0 0
        %1407 = vmatmul.mubr.bf16.gmra.mrb[0].mxu0 %v1250
        %v1408 = vpop.f32.mrb[0].mxu0
        %v1409 = vadd.f32 %v1300, %v1408
        %v1410 = vpop.f32.mrb[0].mxu0
        %v1411 = vpop.f32.mrb[0].mxu0
        %v1412 = vadd.f32 %v1300, %v1411
        %v1413 = vpop.f32.mrb[0].mxu0
        %1414 = vmatprep.mubr.bf16.mxu0 0
        %1415 = vmatmul.mubr.bf16.gmra.mrb[0].mxu0 %v1251
        %v1416 = vpop.f32.mrb[0].mxu0
        %v1417 = vadd.f32 %v1300, %v1416
        %v1418 = vpop.f32.mrb[0].mxu0
        %v1419 = vpop.f32.mrb[0].mxu0
        %v1420 = vadd.f32 %v1300, %v1419
        %v1421 = vpop.f32.mrb[0].mxu0
        %1422 = vmatprep.mubr.bf16.mxu0 0
        %1423 = vmatmul.mubr.bf16.gmra.mrb[0].mxu0 %v1252
        %v1424 = vpop.f32.mrb[0].mxu0
        %v1425 = vadd.f32 %v1300, %v1424
        %v1426 = vpop.f32.mrb[0].mxu0
        %v1427 = vpop.f32.mrb[0].mxu0
        %v1428 = vadd.f32 %v1300, %v1427
        %v1429 = vpop.f32.mrb[0].mxu0
        %1430 = vmatprep.mubr.bf16.mxu0 0
        %1431 = vmatmul.mubr.bf16.gmra.mrb[0].mxu0 %v1253
        %v1432 = vpop.f32.mrb[0].mxu0
        %v1433 = vadd.f32 %v1300, %v1432
        %v1434 = vpop.f32.mrb[0].mxu0
        %v1435 = vpop.f32.mrb[0].mxu0
        %v1436 = vadd.f32 %v1300, %v1435
        %v1437 = vpop.f32.mrb[0].mxu0
        %1438 = vmatprep.mubr.bf16.mxu0 0
        %1439 = vmatmul.mubr.bf16.gmra.mrb[0].mxu0 %v1254
        %v1440 = vpop.f32.mrb[0].mxu0
        %v1441 = vadd.f32 %v1300, %v1440
        %v1442 = vpop.f32.mrb[0].mxu0
        %v1443 = vpop.f32.mrb[0].mxu0
        %v1444 = vadd.f32 %v1300, %v1443
        %v1445 = vpop.f32.mrb[0].mxu0
        %1446 = vmatprep.mubr.bf16.mxu0 0
        %1447 = vmatmul.mubr.bf16.gmra.mrb[0].mxu0 %v1255
        %v1448 = vpop.f32.mrb[0].mxu0
        %v1449 = vadd.f32 %v1300, %v1448
        %v1450 = vpop.f32.mrb[0].mxu0
        %v1451 = vpop.f32.mrb[0].mxu0
        %v1452 = vadd.f32 %v1300, %v1451
        %v1453 = vpop.f32.mrb[0].mxu0
        %1454 = vmatprep.mubr.bf16.mxu0 0
        %1455 = vmatmul.mubr.bf16.gmra.mrb[0].mxu0 %v1256
        %v1456 = vpop.f32.mrb[0].mxu0
        %v1457 = vadd.f32 %v1300, %v1456
        %v1458 = vpop.f32.mrb[0].mxu0
        %v1459 = vpop.f32.mrb[0].mxu0
        %v1460 = vadd.f32 %v1300, %v1459
        %v1461 = vpop.f32.mrb[0].mxu0
        %1462 = vmatprep.mubr.bf16.mxu0 0
        %1463 = vmatmul.mubr.bf16.gmra.mrb[0].mxu0 %v1257
        %v1464 = vpop.f32.mrb[0].mxu0
        %v1465 = vadd.f32 %v1300, %v1464
        %v1466 = vpop.f32.mrb[0].mxu0
        %v1467 = vpop.f32.mrb[0].mxu0
        %v1468 = vadd.f32 %v1300, %v1467
        %v1469 = vpop.f32.mrb[0].mxu0
        %1470 = vmatprep.mubr.bf16.mxu0 0
        %1471 = vmatmul.mubr.bf16.gmra.mrb[0].mxu0 %v1258
        %v1472 = vpop.f32.mrb[0].mxu0
        %v1473 = vadd.f32 %v1300, %v1472
        %v1474 = vpop.f32.mrb[0].mxu0
        %v1475 = vpop.f32.mrb[0].mxu0
        %v1476 = vadd.f32 %v1300, %v1475
        %v1477 = vpop.f32.mrb[0].mxu0
        %1478 = vmatprep.mubr.bf16.mxu0 0
        %1479 = vmatmul.mubr.bf16.gmra.mrb[0].mxu0 %v1259
        %v1480 = vpop.f32.mrb[0].mxu0
        %v1481 = vadd.f32 %v1300, %v1480
        %v1482 = vpop.f32.mrb[0].mxu0
        %v1483 = vpop.f32.mrb[0].mxu0
        %v1484 = vadd.f32 %v1300, %v1483
        %v1485 = vpop.f32.mrb[0].mxu0
        %1486 = vmatprep.mubr.bf16.mxu0 0
        %1487 = vmatmul.mubr.bf16.gmra.mrb[0].mxu0 %v1260
        %v1488 = vpop.f32.mrb[0].mxu0
        %v1489 = vadd.f32 %v1300, %v1488
        %v1490 = vpop.f32.mrb[0].mxu0
        %v1491 = vpop.f32.mrb[0].mxu0
        %v1492 = vadd.f32 %v1300, %v1491
        %v1493 = vpop.f32.mrb[0].mxu0
        %1494 = vmatprep.mubr.bf16.mxu0 0
        %1495 = vmatmul.mubr.bf16.gmra.mrb[0].mxu0 %v1261
        %v1496 = vpop.f32.mrb[0].mxu0
        %v1497 = vadd.f32 %v1300, %v1496
        %v1498 = vpop.f32.mrb[0].mxu0
        %v1499 = vpop.f32.mrb[0].mxu0
        %v1500 = vadd.f32 %v1300, %v1499
        %v1501 = vpop.f32.mrb[0].mxu0
        %1502 = vmatprep.mubr.bf16.mxu0 0
        %1503 = vmatmul.mubr.bf16.gmra.mrb[0].mxu0 %v1262
        %v1504 = vpop.f32.mrb[0].mxu0
        %v1505 = vadd.f32 %v1300, %v1504
        %v1506 = vpop.f32.mrb[0].mxu0
        %v1507 = vpop.f32.mrb[0].mxu0
        %v1508 = vadd.f32 %v1300, %v1507
        %v1509 = vpop.f32.mrb[0].mxu0
        %1510 = vmatprep.mubr.bf16.mxu0 0
        %1511 = vmatmul.mubr.bf16.gmra.mrb[0].mxu0 %v1263
        %v1512 = vpop.f32.mrb[0].mxu0
        %v1513 = vadd.f32 %v1300, %v1512
        %v1514 = vpop.f32.mrb[0].mxu0
        %v1515 = vpop.f32.mrb[0].mxu0
        %v1516 = vadd.f32 %v1300, %v1515
        %v1517 = vpop.f32.mrb[0].mxu0
        %1518 = vmatprep.mubr.bf16.mxu0 0
        %1519 = vmatmul.mubr.bf16.gmra.mrb[0].mxu0 %v1264
        %v1520 = vpop.f32.mrb[0].mxu0
        %v1521 = vadd.f32 %v1300, %v1520
        %v1522 = vpop.f32.mrb[0].mxu0
        %v1523 = vpop.f32.mrb[0].mxu0
        %v1524 = vadd.f32 %v1300, %v1523
        %v1525 = vpop.f32.mrb[0].mxu0
        %1526 = vmatprep.mubr.bf16.mxu0 0
        %1527 = vmatmul.mubr.bf16.gmra.mrb[0].mxu0 %v1265
        %v1528 = vpop.f32.mrb[0].mxu0
        %v1529 = vadd.f32 %v1300, %v1528
        %v1530 = vpop.f32.mrb[0].mxu0
        %v1531 = vpop.f32.mrb[0].mxu0
        %v1532 = vadd.f32 %v1300, %v1531
        %v1533 = vpop.f32.mrb[0].mxu0
        %1534 = vmatprep.mubr.bf16.mxu0 0
        %1535 = vmatmul.mubr.bf16.gmra.mrb[0].mxu0 %v1266
        %v1536 = vpop.f32.mrb[0].mxu0
        %v1537 = vadd.f32 %v1300, %v1536
        %v1538 = vpop.f32.mrb[0].mxu0
        %v1539 = vpop.f32.mrb[0].mxu0
        %v1540 = vadd.f32 %v1300, %v1539
        %v1541 = vpop.f32.mrb[0].mxu0
        %1542 = vmatprep.mubr.bf16.mxu0 0
        %1543 = vmatmul.mubr.bf16.gmra.mrb[0].mxu0 %v1267
        %v1544 = vpop.f32.mrb[0].mxu0
        %v1545 = vadd.f32 %v1300, %v1544
        %v1546 = vpop.f32.mrb[0].mxu0
        %v1547 = vpop.f32.mrb[0].mxu0
        %v1548 = vadd.f32 %v1300, %v1547
        %v1549 = vpop.f32.mrb[0].mxu0
        %1550 = vmatprep.mubr.bf16.mxu0 0
        %1551 = vmatmul.mubr.bf16.gmra.mrb[0].mxu0 %v1268
        %v1552 = vpop.f32.mrb[0].mxu0
        %v1553 = vadd.f32 %v1300, %v1552
        %v1554 = vpop.f32.mrb[0].mxu0
        %v1555 = vpop.f32.mrb[0].mxu0
        %v1556 = vadd.f32 %v1300, %v1555
        %v1557 = vpop.f32.mrb[0].mxu0
        %1558 = vmatprep.mubr.bf16.mxu0 0
        %1559 = vmatmul.mubr.bf16.gmra.mrb[0].mxu0 %v1269
        %v1560 = vpop.f32.mrb[0].mxu0
        %v1561 = vadd.f32 %v1300, %v1560
        %v1562 = vpop.f32.mrb[0].mxu0
        %v1563 = vpop.f32.mrb[0].mxu0
        %v1564 = vadd.f32 %v1300, %v1563
        %v1565 = vpop.f32.mrb[0].mxu0
        %1566 = vmatprep.mubr.bf16.mxu0 0
        %1567 = vmatmul.mubr.bf16.gmra.mrb[0].mxu0 %v1270
        %v1568 = vpop.f32.mrb[0].mxu0
        %v1569 = vadd.f32 %v1300, %v1568
        %v1570 = vpop.f32.mrb[0].mxu0
        %v1571 = vpop.f32.mrb[0].mxu0
        %v1572 = vadd.f32 %v1300, %v1571
        %v1573 = vpop.f32.mrb[0].mxu0
        %1574 = vmatprep.mubr.bf16.mxu0 0
        %1575 = vmatmul.mubr.bf16.gmra.mrb[0].mxu0 %v1271
        %v1576 = vpop.f32.mrb[0].mxu0
        %v1577 = vadd.f32 %v1300, %v1576
        %v1578 = vpop.f32.mrb[0].mxu0
        %v1579 = vpop.f32.mrb[0].mxu0
        %v1580 = vadd.f32 %v1300, %v1579
        %v1581 = vpop.f32.mrb[0].mxu0
        %1582 = vmatprep.mubr.bf16.mxu0 0
        %1583 = vmatmul.mubr.bf16.gmra.mrb[0].mxu0 %v1272
        %v1584 = vpop.f32.mrb[0].mxu0
        %v1585 = vadd.f32 %v1300, %v1584
        %v1586 = vpop.f32.mrb[0].mxu0
        %v1587 = vpop.f32.mrb[0].mxu0
        %v1588 = vadd.f32 %v1300, %v1587
        %v1589 = vpop.f32.mrb[0].mxu0
        %1590 = vmatprep.mubr.bf16.mxu0 0
        %1591 = vmatmul.mubr.bf16.gmra.mrb[0].mxu0 %v1273
        %v1592 = vpop.f32.mrb[0].mxu0
        %v1593 = vadd.f32 %v1300, %v1592
        %v1594 = vpop.f32.mrb[0].mxu0
        %v1595 = vpop.f32.mrb[0].mxu0
        %v1596 = vadd.f32 %v1300, %v1595
        %v1597 = vpop.f32.mrb[0].mxu0
        %1598 = vmatprep.mubr.bf16.mxu0 0
        %1599 = vmatmul.mubr.bf16.gmra.mrb[0].mxu0 %v1274
        %v1600 = vpop.f32.mrb[0].mxu0
        %v1601 = vadd.f32 %v1300, %v1600
        %v1602 = vpop.f32.mrb[0].mxu0
        %v1603 = vpop.f32.mrb[0].mxu0
        %v1604 = vadd.f32 %v1300, %v1603
        %v1605 = vpop.f32.mrb[0].mxu0
        %1606 = vmatprep.mubr.bf16.mxu0 0
        %1607 = vmatmul.mubr.bf16.gmra.mrb[0].mxu0 %v1275
        %v1608 = vpop.f32.mrb[0].mxu0
        %v1609 = vadd.f32 %v1300, %v1608
        %v1610 = vpop.f32.mrb[0].mxu0
        %v1611 = vpop.f32.mrb[0].mxu0
        %v1612 = vadd.f32 %v1300, %v1611
        %v1613 = vpop.f32.mrb[0].mxu0
        %1614 = vmatprep.mubr.bf16.mxu0 0
        %1615 = vmatmul.mubr.bf16.gmra.mrb[0].mxu0 %v1276
        %v1616 = vpop.f32.mrb[0].mxu0
        %v1617 = vadd.f32 %v1300, %v1616
        %v1618 = vpop.f32.mrb[0].mxu0
        %v1619 = vpop.f32.mrb[0].mxu0
        %v1620 = vadd.f32 %v1300, %v1619
        %v1621 = vpop.f32.mrb[0].mxu0
        %1622 = vmatprep.mubr.bf16.mxu0 0
        %1623 = vmatmul.mubr.bf16.gmra.mrb[0].mxu0 %v1277
        %v1624 = vpop.f32.mrb[0].mxu0
        %v1625 = vadd.f32 %v1300, %v1624
        %v1626 = vpop.f32.mrb[0].mxu0
        %v1627 = vpop.f32.mrb[0].mxu0
        %v1628 = vadd.f32 %v1300, %v1627
        %v1629 = vpop.f32.mrb[0].mxu0
        %1630 = vmatprep.mubr.bf16.mxu0 0
        %1631 = vmatmul.mubr.bf16.gmra.mrb[0].mxu0 %v1278
        %v1632 = vpop.f32.mrb[0].mxu0
        %v1633 = vadd.f32 %v1300, %v1632
        %v1634 = vpop.f32.mrb[0].mxu0
        %v1635 = vpop.f32.mrb[0].mxu0
        %v1636 = vadd.f32 %v1300, %v1635
        %v1637 = vpop.f32.mrb[0].mxu0
        %1638 = vdwg.mxu0
        %v1639 = vmax.f32 %v1385, 0.0
        %v1640 = vmax.f32 %v1388, 0.0
        %v1641 = vmax.f32 %v1393, 0.0
        %v1642 = vmax.f32 %v1396, 0.0
        %v1643 = vmax.f32 %v1401, 0.0
        %v1644 = vmax.f32 %v1404, 0.0
        %v1645 = vmax.f32 %v1409, 0.0
        %v1646 = vmax.f32 %v1412, 0.0
        %v1647 = vmax.f32 %v1417, 0.0
        %v1648 = vmax.f32 %v1420, 0.0
        %v1649 = vmax.f32 %v1425, 0.0
        %v1650 = vmax.f32 %v1428, 0.0
        %v1651 = vmax.f32 %v1433, 0.0
        %v1652 = vmax.f32 %v1436, 0.0
        %v1653 = vmax.f32 %v1441, 0.0
        %v1654 = vmax.f32 %v1444, 0.0
        %v1655 = vmax.f32 %v1449, 0.0
        %v1656 = vmax.f32 %v1452, 0.0
        %v1657 = vmax.f32 %v1457, 0.0
        %v1658 = vmax.f32 %v1460, 0.0
        %v1659 = vmax.f32 %v1465, 0.0
        %v1660 = vmax.f32 %v1468, 0.0
        %v1661 = vmax.f32 %v1473, 0.0
        %v1662 = vmax.f32 %v1476, 0.0
        %v1663 = vmax.f32 %v1481, 0.0
        %v1664 = vmax.f32 %v1484, 0.0
        %v1665 = vmax.f32 %v1489, 0.0
        %v1666 = vmax.f32 %v1492, 0.0
        %v1667 = vmax.f32 %v1497, 0.0
        %v1668 = vmax.f32 %v1500, 0.0
        %v1669 = vmax.f32 %v1505, 0.0
        %v1670 = vmax.f32 %v1508, 0.0
        %v1671 = vmax.f32 %v1513, 0.0
        %v1672 = vmax.f32 %v1516, 0.0
        %v1673 = vmax.f32 %v1521, 0.0
        %v1674 = vmax.f32 %v1524, 0.0
        %v1675 = vmax.f32 %v1529, 0.0
        %v1676 = vmax.f32 %v1532, 0.0
        %v1677 = vmax.f32 %v1537, 0.0
        %v1678 = vmax.f32 %v1540, 0.0
        %v1679 = vmax.f32 %v1545, 0.0
        %v1680 = vmax.f32 %v1548, 0.0
        %v1681 = vmax.f32 %v1553, 0.0
        %v1682 = vmax.f32 %v1556, 0.0
        %v1683 = vmax.f32 %v1561, 0.0
        %v1684 = vmax.f32 %v1564, 0.0
        %v1685 = vmax.f32 %v1569, 0.0
        %v1686 = vmax.f32 %v1572, 0.0
        %v1687 = vmax.f32 %v1577, 0.0
        %v1688 = vmax.f32 %v1580, 0.0
        %v1689 = vmax.f32 %v1585, 0.0
        %v1690 = vmax.f32 %v1588, 0.0
        %v1691 = vmax.f32 %v1593, 0.0
        %v1692 = vmax.f32 %v1596, 0.0
        %v1693 = vmax.f32 %v1601, 0.0
        %v1694 = vmax.f32 %v1604, 0.0
        %v1695 = vmax.f32 %v1609, 0.0
        %v1696 = vmax.f32 %v1612, 0.0
        %v1697 = vmax.f32 %v1617, 0.0
        %v1698 = vmax.f32 %v1620, 0.0
        %v1699 = vmax.f32 %v1625, 0.0
        %v1700 = vmax.f32 %v1628, 0.0
        %v1701 = vmax.f32 %v1633, 0.0
        %v1702 = vmax.f32 %v1636, 0.0
        %v1703 = vld [vmem:[%s3] sm:$0x1]
        %v1705 = vlaneseq
        %v1706 = vshrl.u32 %v1705, 7
        %v1707 = vsub.s32 0, %v1706
        %v1708 = vrot.slane %v1703, %v1707
        %v1710 = vmul.f32 %v1639, %v1708
        %v1711 = vmul.f32 %v1640, %v1708
        %v1712 = vmul.f32 %v1641, %v1708
        %v1713 = vmul.f32 %v1642, %v1708
        %v1714 = vmul.f32 %v1643, %v1708
        %v1715 = vmul.f32 %v1644, %v1708
        %v1716 = vmul.f32 %v1645, %v1708
        %v1717 = vmul.f32 %v1646, %v1708
        %v1718 = vmul.f32 %v1647, %v1708
        %v1719 = vmul.f32 %v1648, %v1708
        %v1720 = vmul.f32 %v1649, %v1708
        %v1721 = vmul.f32 %v1650, %v1708
        %v1722 = vmul.f32 %v1651, %v1708
        %v1723 = vmul.f32 %v1652, %v1708
        %v1724 = vmul.f32 %v1653, %v1708
        %v1725 = vmul.f32 %v1654, %v1708
        %v1726 = vmul.f32 %v1655, %v1708
        %v1727 = vmul.f32 %v1656, %v1708
        %v1728 = vmul.f32 %v1657, %v1708
        %v1729 = vmul.f32 %v1658, %v1708
        %v1730 = vmul.f32 %v1659, %v1708
        %v1731 = vmul.f32 %v1660, %v1708
        %v1732 = vmul.f32 %v1661, %v1708
        %v1733 = vmul.f32 %v1662, %v1708
        %v1734 = vmul.f32 %v1663, %v1708
        %v1735 = vmul.f32 %v1664, %v1708
        %v1736 = vmul.f32 %v1665, %v1708
        %v1737 = vmul.f32 %v1666, %v1708
        %v1738 = vmul.f32 %v1667, %v1708
        %v1739 = vmul.f32 %v1668, %v1708
        %v1740 = vmul.f32 %v1669, %v1708
        %v1741 = vmul.f32 %v1670, %v1708
        %v1742 = vmul.f32 %v1671, %v1708
        %v1743 = vmul.f32 %v1672, %v1708
        %v1744 = vmul.f32 %v1673, %v1708
        %v1745 = vmul.f32 %v1674, %v1708
        %v1746 = vmul.f32 %v1675, %v1708
        %v1747 = vmul.f32 %v1676, %v1708
        %v1748 = vmul.f32 %v1677, %v1708
        %v1749 = vmul.f32 %v1678, %v1708
        %v1750 = vmul.f32 %v1679, %v1708
        %v1751 = vmul.f32 %v1680, %v1708
        %v1752 = vmul.f32 %v1681, %v1708
        %v1753 = vmul.f32 %v1682, %v1708
        %v1754 = vmul.f32 %v1683, %v1708
        %v1755 = vmul.f32 %v1684, %v1708
        %v1756 = vmul.f32 %v1685, %v1708
        %v1757 = vmul.f32 %v1686, %v1708
        %v1758 = vmul.f32 %v1687, %v1708
        %v1759 = vmul.f32 %v1688, %v1708
        %v1760 = vmul.f32 %v1689, %v1708
        %v1761 = vmul.f32 %v1690, %v1708
        %v1762 = vmul.f32 %v1691, %v1708
        %v1763 = vmul.f32 %v1692, %v1708
        %v1764 = vmul.f32 %v1693, %v1708
        %v1765 = vmul.f32 %v1694, %v1708
        %v1766 = vmul.f32 %v1695, %v1708
        %v1767 = vmul.f32 %v1696, %v1708
        %v1768 = vmul.f32 %v1697, %v1708
        %v1769 = vmul.f32 %v1698, %v1708
        %v1770 = vmul.f32 %v1699, %v1708
        %v1771 = vmul.f32 %v1700, %v1708
        %v1772 = vmul.f32 %v1701, %v1708
        %v1773 = vmul.f32 %v1702, %v1708
        %1774 = vadd.xlane.f32.xlu0 %v1710
        %v1775 = vpop.xlane.xlu0 %1774
        %1776 = vadd.xlane.f32.xlu0 %v1711
        %v1777 = vpop.xlane.xlu0 %1776
        %1778 = vadd.xlane.f32.xlu0 %v1712
        %v1779 = vpop.xlane.xlu0 %1778
        %1780 = vadd.xlane.f32.xlu0 %v1713
        %v1781 = vpop.xlane.xlu0 %1780
        %1782 = vadd.xlane.f32.xlu0 %v1714
        %v1783 = vpop.xlane.xlu0 %1782
        %1784 = vadd.xlane.f32.xlu0 %v1715
        %v1785 = vpop.xlane.xlu0 %1784
        %1786 = vadd.xlane.f32.xlu0 %v1716
        %v1787 = vpop.xlane.xlu0 %1786
        %1788 = vadd.xlane.f32.xlu0 %v1717
        %v1789 = vpop.xlane.xlu0 %1788
        %1790 = vadd.xlane.f32.xlu0 %v1718
        %v1791 = vpop.xlane.xlu0 %1790
        %1792 = vadd.xlane.f32.xlu0 %v1719
        %v1793 = vpop.xlane.xlu0 %1792
        %1794 = vadd.xlane.f32.xlu0 %v1720
        %v1795 = vpop.xlane.xlu0 %1794
        %1796 = vadd.xlane.f32.xlu0 %v1721
        %v1797 = vpop.xlane.xlu0 %1796
        %1798 = vadd.xlane.f32.xlu0 %v1722
        %v1799 = vpop.xlane.xlu0 %1798
        %1800 = vadd.xlane.f32.xlu0 %v1723
        %v1801 = vpop.xlane.xlu0 %1800
        %1802 = vadd.xlane.f32.xlu0 %v1724
        %v1803 = vpop.xlane.xlu0 %1802
        %1804 = vadd.xlane.f32.xlu0 %v1725
        %v1805 = vpop.xlane.xlu0 %1804
        %1806 = vadd.xlane.f32.xlu0 %v1726
        %v1807 = vpop.xlane.xlu0 %1806
        %1808 = vadd.xlane.f32.xlu0 %v1727
        %v1809 = vpop.xlane.xlu0 %1808
        %1810 = vadd.xlane.f32.xlu0 %v1728
        %v1811 = vpop.xlane.xlu0 %1810
        %1812 = vadd.xlane.f32.xlu0 %v1729
        %v1813 = vpop.xlane.xlu0 %1812
        %1814 = vadd.xlane.f32.xlu0 %v1730
        %v1815 = vpop.xlane.xlu0 %1814
        %1816 = vadd.xlane.f32.xlu0 %v1731
        %v1817 = vpop.xlane.xlu0 %1816
        %1818 = vadd.xlane.f32.xlu0 %v1732
        %v1819 = vpop.xlane.xlu0 %1818
        %1820 = vadd.xlane.f32.xlu0 %v1733
        %v1821 = vpop.xlane.xlu0 %1820
        %1822 = vadd.xlane.f32.xlu0 %v1734
        %v1823 = vpop.xlane.xlu0 %1822
        %1824 = vadd.xlane.f32.xlu0 %v1735
        %v1825 = vpop.xlane.xlu0 %1824
        %1826 = vadd.xlane.f32.xlu0 %v1736
        %v1827 = vpop.xlane.xlu0 %1826
        %1828 = vadd.xlane.f32.xlu0 %v1737
        %v1829 = vpop.xlane.xlu0 %1828
        %1830 = vadd.xlane.f32.xlu0 %v1738
        %v1831 = vpop.xlane.xlu0 %1830
        %1832 = vadd.xlane.f32.xlu0 %v1739
        %v1833 = vpop.xlane.xlu0 %1832
        %1834 = vadd.xlane.f32.xlu0 %v1740
        %v1835 = vpop.xlane.xlu0 %1834
        %1836 = vadd.xlane.f32.xlu0 %v1741
        %v1837 = vpop.xlane.xlu0 %1836
        %1838 = vadd.xlane.f32.xlu0 %v1742
        %v1839 = vpop.xlane.xlu0 %1838
        %1840 = vadd.xlane.f32.xlu0 %v1743
        %v1841 = vpop.xlane.xlu0 %1840
        %1842 = vadd.xlane.f32.xlu0 %v1744
        %v1843 = vpop.xlane.xlu0 %1842
        %1844 = vadd.xlane.f32.xlu0 %v1745
        %v1845 = vpop.xlane.xlu0 %1844
        %1846 = vadd.xlane.f32.xlu0 %v1746
        %v1847 = vpop.xlane.xlu0 %1846
        %1848 = vadd.xlane.f32.xlu0 %v1747
        %v1849 = vpop.xlane.xlu0 %1848
        %1850 = vadd.xlane.f32.xlu0 %v1748
        %v1851 = vpop.xlane.xlu0 %1850
        %1852 = vadd.xlane.f32.xlu0 %v1749
        %v1853 = vpop.xlane.xlu0 %1852
        %1854 = vadd.xlane.f32.xlu0 %v1750
        %v1855 = vpop.xlane.xlu0 %1854
        %1856 = vadd.xlane.f32.xlu0 %v1751
        %v1857 = vpop.xlane.xlu0 %1856
        %1858 = vadd.xlane.f32.xlu0 %v1752
        %v1859 = vpop.xlane.xlu0 %1858
        %1860 = vadd.xlane.f32.xlu0 %v1753
        %v1861 = vpop.xlane.xlu0 %1860
        %1862 = vadd.xlane.f32.xlu0 %v1754
        %v1863 = vpop.xlane.xlu0 %1862
        %1864 = vadd.xlane.f32.xlu0 %v1755
        %v1865 = vpop.xlane.xlu0 %1864
        %1866 = vadd.xlane.f32.xlu0 %v1756
        %v1867 = vpop.xlane.xlu0 %1866
        %1868 = vadd.xlane.f32.xlu0 %v1757
        %v1869 = vpop.xlane.xlu0 %1868
        %1870 = vadd.xlane.f32.xlu0 %v1758
        %v1871 = vpop.xlane.xlu0 %1870
        %1872 = vadd.xlane.f32.xlu0 %v1759
        %v1873 = vpop.xlane.xlu0 %1872
        %1874 = vadd.xlane.f32.xlu0 %v1760
        %v1875 = vpop.xlane.xlu0 %1874
        %1876 = vadd.xlane.f32.xlu0 %v1761
        %v1877 = vpop.xlane.xlu0 %1876
        %1878 = vadd.xlane.f32.xlu0 %v1762
        %v1879 = vpop.xlane.xlu0 %1878
        %1880 = vadd.xlane.f32.xlu0 %v1763
        %v1881 = vpop.xlane.xlu0 %1880
        %1882 = vadd.xlane.f32.xlu0 %v1764
        %v1883 = vpop.xlane.xlu0 %1882
        %1884 = vadd.xlane.f32.xlu0 %v1765
        %v1885 = vpop.xlane.xlu0 %1884
        %1886 = vadd.xlane.f32.xlu0 %v1766
        %v1887 = vpop.xlane.xlu0 %1886
        %1888 = vadd.xlane.f32.xlu0 %v1767
        %v1889 = vpop.xlane.xlu0 %1888
        %1890 = vadd.xlane.f32.xlu0 %v1768
        %v1891 = vpop.xlane.xlu0 %1890
        %1892 = vadd.xlane.f32.xlu0 %v1769
        %v1893 = vpop.xlane.xlu0 %1892
        %1894 = vadd.xlane.f32.xlu0 %v1770
        %v1895 = vpop.xlane.xlu0 %1894
        %1896 = vadd.xlane.f32.xlu0 %v1771
        %v1897 = vpop.xlane.xlu0 %1896
        %1898 = vadd.xlane.f32.xlu0 %v1772
        %v1899 = vpop.xlane.xlu0 %1898
        %1900 = vadd.xlane.f32.xlu0 %v1773
        %v1901 = vpop.xlane.xlu0 %1900
        %s1902 = sld [smem:[#allocation2]]
        %v1903 = vstv %s1902
        %v1904 = vadd.f32 %v1775, %v1903
        %v1905 = vadd.f32 %v1777, %v1903
        %v1906 = vadd.f32 %v1779, %v1903
        %v1907 = vadd.f32 %v1781, %v1903
        %v1908 = vadd.f32 %v1783, %v1903
        %v1909 = vadd.f32 %v1785, %v1903
        %v1910 = vadd.f32 %v1787, %v1903
        %v1911 = vadd.f32 %v1789, %v1903
        %v1912 = vadd.f32 %v1791, %v1903
        %v1913 = vadd.f32 %v1793, %v1903
        %v1914 = vadd.f32 %v1795, %v1903
        %v1915 = vadd.f32 %v1797, %v1903
        %v1916 = vadd.f32 %v1799, %v1903
        %v1917 = vadd.f32 %v1801, %v1903
        %v1918 = vadd.f32 %v1803, %v1903
        %v1919 = vadd.f32 %v1805, %v1903
        %v1920 = vadd.f32 %v1807, %v1903
        %v1921 = vadd.f32 %v1809, %v1903
        %v1922 = vadd.f32 %v1811, %v1903
        %v1923 = vadd.f32 %v1813, %v1903
        %v1924 = vadd.f32 %v1815, %v1903
        %v1925 = vadd.f32 %v1817, %v1903
        %v1926 = vadd.f32 %v1819, %v1903
        %v1927 = vadd.f32 %v1821, %v1903
        %v1928 = vadd.f32 %v1823, %v1903
        %v1929 = vadd.f32 %v1825, %v1903
        %v1930 = vadd.f32 %v1827, %v1903
        %v1931 = vadd.f32 %v1829, %v1903
        %v1932 = vadd.f32 %v1831, %v1903
        %v1933 = vadd.f32 %v1833, %v1903
        %v1934 = vadd.f32 %v1835, %v1903
        %v1935 = vadd.f32 %v1837, %v1903
        %v1936 = vadd.f32 %v1839, %v1903
        %v1937 = vadd.f32 %v1841, %v1903
        %v1938 = vadd.f32 %v1843, %v1903
        %v1939 = vadd.f32 %v1845, %v1903
        %v1940 = vadd.f32 %v1847, %v1903
        %v1941 = vadd.f32 %v1849, %v1903
        %v1942 = vadd.f32 %v1851, %v1903
        %v1943 = vadd.f32 %v1853, %v1903
        %v1944 = vadd.f32 %v1855, %v1903
        %v1945 = vadd.f32 %v1857, %v1903
        %v1946 = vadd.f32 %v1859, %v1903
        %v1947 = vadd.f32 %v1861, %v1903
        %v1948 = vadd.f32 %v1863, %v1903
        %v1949 = vadd.f32 %v1865, %v1903
        %v1950 = vadd.f32 %v1867, %v1903
        %v1951 = vadd.f32 %v1869, %v1903
        %v1952 = vadd.f32 %v1871, %v1903
        %v1953 = vadd.f32 %v1873, %v1903
        %v1954 = vadd.f32 %v1875, %v1903
        %v1955 = vadd.f32 %v1877, %v1903
        %v1956 = vadd.f32 %v1879, %v1903
        %v1957 = vadd.f32 %v1881, %v1903
        %v1958 = vadd.f32 %v1883, %v1903
        %v1959 = vadd.f32 %v1885, %v1903
        %v1960 = vadd.f32 %v1887, %v1903
        %v1961 = vadd.f32 %v1889, %v1903
        %v1962 = vadd.f32 %v1891, %v1903
        %v1963 = vadd.f32 %v1893, %v1903
        %v1964 = vadd.f32 %v1895, %v1903
        %v1965 = vadd.f32 %v1897, %v1903
        %v1966 = vadd.f32 %v1899, %v1903
        %v1967 = vadd.f32 %v1901, %v1903
        %1968 = vxpose.xlu0.b32.start [1/16] %v1904, 128
        %1969 = vxpose.xlu0.b32.cont [2/16] %v1905, 128
        %1970 = vxpose.xlu0.b32.cont [3/16] %v1906, 128
        %1971 = vxpose.xlu0.b32.cont [4/16] %v1907, 128
        %1972 = vxpose.xlu0.b32.cont [5/16] %v1908, 128
        %1973 = vxpose.xlu0.b32.cont [6/16] %v1909, 128
        %1974 = vxpose.xlu0.b32.cont [7/16] %v1910, 128
        %1975 = vxpose.xlu0.b32.cont [8/16] %v1911, 128
        %1976 = vxpose.xlu0.b32.cont [9/16] %v1912, 128
        %1977 = vxpose.xlu0.b32.cont [10/16] %v1913, 128
        %1978 = vxpose.xlu0.b32.cont [11/16] %v1914, 128
        %1979 = vxpose.xlu0.b32.cont [12/16] %v1915, 128
        %1980 = vxpose.xlu0.b32.cont [13/16] %v1916, 128
        %1981 = vxpose.xlu0.b32.cont [14/16] %v1917, 128
        %1982 = vxpose.xlu0.b32.cont [15/16] %v1918, 128
        %1983 = vxpose.xlu0.b32.end [16/16] %v1919, 128
        %v1984 = vpop.trf.xlu0
        %v1985 = vpop.trf.xlu0
        %v1986 = vpop.trf.xlu0
        %v1987 = vpop.trf.xlu0
        %v1988 = vpop.trf.xlu0
        %v1989 = vpop.trf.xlu0
        %v1990 = vpop.trf.xlu0
        %v1991 = vpop.trf.xlu0
        %v1992 = vpop.trf.xlu0
        %v1993 = vpop.trf.xlu0
        %v1994 = vpop.trf.xlu0
        %v1995 = vpop.trf.xlu0
        %v1996 = vpop.trf.xlu0
        %v1997 = vpop.trf.xlu0
        %v1998 = vpop.trf.xlu0
        %v1999 = vpop.trf.xlu0
        %2000 = vxpose.xlu0.b32.start [1/16] %v1920, 128
        %2001 = vxpose.xlu0.b32.cont [2/16] %v1921, 128
        %2002 = vxpose.xlu0.b32.cont [3/16] %v1922, 128
        %2003 = vxpose.xlu0.b32.cont [4/16] %v1923, 128
        %2004 = vxpose.xlu0.b32.cont [5/16] %v1924, 128
        %2005 = vxpose.xlu0.b32.cont [6/16] %v1925, 128
        %2006 = vxpose.xlu0.b32.cont [7/16] %v1926, 128
        %2007 = vxpose.xlu0.b32.cont [8/16] %v1927, 128
        %2008 = vxpose.xlu0.b32.cont [9/16] %v1928, 128
        %2009 = vxpose.xlu0.b32.cont [10/16] %v1929, 128
        %2010 = vxpose.xlu0.b32.cont [11/16] %v1930, 128
        %2011 = vxpose.xlu0.b32.cont [12/16] %v1931, 128
        %2012 = vxpose.xlu0.b32.cont [13/16] %v1932, 128
        %2013 = vxpose.xlu0.b32.cont [14/16] %v1933, 128
        %2014 = vxpose.xlu0.b32.cont [15/16] %v1934, 128
        %2015 = vxpose.xlu0.b32.end [16/16] %v1935, 128
        %v2016 = vpop.trf.xlu0
        %v2017 = vpop.trf.xlu0
        %v2018 = vpop.trf.xlu0
        %v2019 = vpop.trf.xlu0
        %v2020 = vpop.trf.xlu0
        %v2021 = vpop.trf.xlu0
        %v2022 = vpop.trf.xlu0
        %v2023 = vpop.trf.xlu0
        %v2024 = vpop.trf.xlu0
        %v2025 = vpop.trf.xlu0
        %v2026 = vpop.trf.xlu0
        %v2027 = vpop.trf.xlu0
        %v2028 = vpop.trf.xlu0
        %v2029 = vpop.trf.xlu0
        %v2030 = vpop.trf.xlu0
        %v2031 = vpop.trf.xlu0
        %2032 = vxpose.xlu0.b32.start [1/16] %v1936, 128
        %2033 = vxpose.xlu0.b32.cont [2/16] %v1937, 128
        %2034 = vxpose.xlu0.b32.cont [3/16] %v1938, 128
        %2035 = vxpose.xlu0.b32.cont [4/16] %v1939, 128
        %2036 = vxpose.xlu0.b32.cont [5/16] %v1940, 128
        %2037 = vxpose.xlu0.b32.cont [6/16] %v1941, 128
        %2038 = vxpose.xlu0.b32.cont [7/16] %v1942, 128
        %2039 = vxpose.xlu0.b32.cont [8/16] %v1943, 128
        %2040 = vxpose.xlu0.b32.cont [9/16] %v1944, 128
        %2041 = vxpose.xlu0.b32.cont [10/16] %v1945, 128
        %2042 = vxpose.xlu0.b32.cont [11/16] %v1946, 128
        %2043 = vxpose.xlu0.b32.cont [12/16] %v1947, 128
        %2044 = vxpose.xlu0.b32.cont [13/16] %v1948, 128
        %2045 = vxpose.xlu0.b32.cont [14/16] %v1949, 128
        %2046 = vxpose.xlu0.b32.cont [15/16] %v1950, 128
        %2047 = vxpose.xlu0.b32.end [16/16] %v1951, 128
        %v2048 = vpop.trf.xlu0
        %v2049 = vpop.trf.xlu0
        %v2050 = vpop.trf.xlu0
        %v2051 = vpop.trf.xlu0
        %v2052 = vpop.trf.xlu0
        %v2053 = vpop.trf.xlu0
        %v2054 = vpop.trf.xlu0
        %v2055 = vpop.trf.xlu0
        %v2056 = vpop.trf.xlu0
        %v2057 = vpop.trf.xlu0
        %v2058 = vpop.trf.xlu0
        %v2059 = vpop.trf.xlu0
        %v2060 = vpop.trf.xlu0
        %v2061 = vpop.trf.xlu0
        %v2062 = vpop.trf.xlu0
        %v2063 = vpop.trf.xlu0
        %2064 = vxpose.xlu0.b32.start [1/16] %v1952, 128
        %2065 = vxpose.xlu0.b32.cont [2/16] %v1953, 128
        %2066 = vxpose.xlu0.b32.cont [3/16] %v1954, 128
        %2067 = vxpose.xlu0.b32.cont [4/16] %v1955, 128
        %2068 = vxpose.xlu0.b32.cont [5/16] %v1956, 128
        %2069 = vxpose.xlu0.b32.cont [6/16] %v1957, 128
        %2070 = vxpose.xlu0.b32.cont [7/16] %v1958, 128
        %2071 = vxpose.xlu0.b32.cont [8/16] %v1959, 128
        %2072 = vxpose.xlu0.b32.cont [9/16] %v1960, 128
        %2073 = vxpose.xlu0.b32.cont [10/16] %v1961, 128
        %2074 = vxpose.xlu0.b32.cont [11/16] %v1962, 128
        %2075 = vxpose.xlu0.b32.cont [12/16] %v1963, 128
        %2076 = vxpose.xlu0.b32.cont [13/16] %v1964, 128
        %2077 = vxpose.xlu0.b32.cont [14/16] %v1965, 128
        %2078 = vxpose.xlu0.b32.cont [15/16] %v1966, 128
        %2079 = vxpose.xlu0.b32.end [16/16] %v1967, 128
        %v2080 = vpop.trf.xlu0
        %v2081 = vpop.trf.xlu0
        %v2082 = vpop.trf.xlu0
        %v2083 = vpop.trf.xlu0
        %v2084 = vpop.trf.xlu0
        %v2085 = vpop.trf.xlu0
        %v2086 = vpop.trf.xlu0
        %v2087 = vpop.trf.xlu0
        %v2088 = vpop.trf.xlu0
        %v2089 = vpop.trf.xlu0
        %v2090 = vpop.trf.xlu0
        %v2091 = vpop.trf.xlu0
        %v2092 = vpop.trf.xlu0
        %v2093 = vpop.trf.xlu0
        %v2094 = vpop.trf.xlu0
        %v2095 = vpop.trf.xlu0
        %v2100 = vcombine.low %v1984, %v2016
        %v2101 = vcombine.low %v2048, %v2080
        %v2103 = vunpack.c.l.s4 1966171168
        %v2104 = vunpack.c.0.s8 %v2103
        %v2105 = vlaneseq
        %v2106 = vshrl.u32 %v2105, 7
        %v2107 = vsub.s32 %v2104, %v2106
        %v2108 = vrot.slane %v2100, %v2107
        %v2110 = vunpack.c.l.s4 1966171168
        %v2111 = vunpack.c.0.s8 %v2110
        %v2112 = vlaneseq
        %v2113 = vshrl.u32 %v2112, 7
        %v2114 = vsub.s32 %v2111, %v2113
        %v2115 = vrot.slane %v2101, %v2114
        %v2116 = vcombine.low %v2108, %v2115
        %v2118 = vunpack.c.l.s4 1966171168
        %v2119 = vunpack.c.0.s8 %v2118
        %v2120 = vlaneseq
        %v2121 = vshrl.u32 %v2120, 7
        %v2122 = vsub.s32 %v2119, %v2121
        %v2123 = vrot.slane %v2116, %v2122
        %v2125 = vlaneseq
        %vm2126 = vcmp.ge.s32.totalorder %v2125, 0
        %vm2127 = vcmp.lt.s32.totalorder %v2125, 512
        %vm2128 = vmand %vm2126, %vm2127
        %2129 = vst.msk [vmem:[%s264] sm:$0xf] %vm2128, %v2123
        %s2130 = sand.u32 %s142, 1
        %s2131 = scalar_lea.sflag [#allocation5], %s2130
        %s2132 = sand.u32 %s142, 1
        %s2133 = smul.addr %s2132, 4
        %s2134 = scalar_lea.vmem [#allocation8], %s2133
        // Predicated region
        $region49: #{tpu_custom_call.1} parent=39 // pred_check
          %p2135 = pneg %p152
        $region50: #{tpu_custom_call.1} parent=39 // pred_check_branch
          %2137 = sbr.rel (%p2135) target = $region52
        $region51: #{tpu_custom_call.1} parent=39 // pred_region
          %s2139 = ssub.s32 64, 64
          %2140 = vsyncadd %s2131, %s2139
          %s2141 = smul.addr %s24, 4
          %s2142 = smul.addr %s2141, 16
          %s2143 = scalar_lea.hbm %s5, %s2142
          %s2145 = sshll.u32 %s2134, 4
          %s2146 = int_to_ptr.vmem [resolvable:$true] %s2145
          %2148 = dma.vmem_to_hbm [thread:$0]  %s2146, 64, %s2143, %s2131
        $region52: #{tpu_custom_call.1} parent=39 // pred_fallthru
          _
      $region40: #{tpu_custom_call.1} parent=5 // pred_fallthru
        _
      %p2149 = scmp.le.s32.totalorder 2, %s19
      // Predicated region
      $region53: #{tpu_custom_call.1} parent=5 // pred_check
        %p2150 = pneg %p2149
      $region54: #{tpu_custom_call.1} parent=5 // pred_check_branch
        %2152 = sbr.rel (%p2150) target = $region56
      $region55: #{tpu_custom_call.1} parent=5 // pred_region
        %s2153 = ssub.s32 %s19, 2
        // Predicated region
        $region57: #{tpu_custom_call.1} parent=55 // pred_check
          %p2154 = pneg %p158
        $region58: #{tpu_custom_call.1} parent=55 // pred_check_branch
          %2156 = sbr.rel (%p2154) target = $region60
        $region59: #{tpu_custom_call.1} parent=55 // pred_region
          %s2157 = sand.u32 %s143, 1
          %s2158 = scalar_lea.sflag [#allocation5], %s2157
          %s2159 = sand.u32 %s143, 1
          %s2160 = smul.addr %s2159, 4
          %s2161 = scalar_lea.vmem [#allocation8], %s2160
          %2162 = dma.done %s2158, 64
        $region60: #{tpu_custom_call.1} parent=55 // pred_fallthru
          _
      $region56: #{tpu_custom_call.1} parent=5 // pred_fallthru
        _
    $region6: #{tpu_custom_call.1} parent=1 // loop_footer
      %s23 = sadd.s32 1, %s19
    $region7: #{tpu_custom_call.1} parent=1 // loop_footer_branch
      %18 = sbr.rel target = $region3
    $region8: #{tpu_custom_call.1} parent=1 // loop_exit
      _
    %2163 = vsyncpa [#allocation4], 1
    %s2164 = scalar_lea.sflag [#allocation4], 1
    %2165 = vsyncpa %s2164, 1
    %2166 = vsyncpa [#allocation7], 1
    %2167 = vsyncpa [#allocation5], 1
    %s2168 = scalar_lea.sflag [#allocation5], 1
    %2169 = vsyncpa %s2168, 1

</llo_original>
